<compile_context>
chip_gen: v6e
topology: v6e:2x2x1
jax: 0.10.0
libtpu: 0.0.40
codegen_flags: <defaults>
</compile_context>

<pallas_src>
import jax
import jax.numpy as jnp
from jax import lax
from jax.experimental import pallas as pl
from jax.experimental.pallas import tpu as pltpu

EPS = 1e-5  # torch.nn.LayerNorm default eps (the NORM config value)


def _ceil_to(x, m):
    return (x + m - 1) // m * m


def _cdiv(a, b):
    return -(-a // b)


def _lm_kernel(ids_ref, emb_hbm, head_ref, prm_ref, o_ref, xbuf, hbuf, sem):
    """Grid = (token tiles [parallel], vocab tiles [arbitrary])."""
    i = pl.program_id(0)          # token-tile index
    j = pl.program_id(1)          # vocab-tile index
    tm = xbuf.shape[0]

    # --- once per token tile: DMA-gather embedding rows + LayerNorm ---------
    @pl.when(j == 0)
    def _gather_and_norm():
        base = i * tm

        # nn.Embedding lookup as a DMA gather: one row copy per token, all
        # issued before any wait so the copies overlap each other.
        @pl.loop(0, tm)
        def _issue(r):
            pltpu.make_async_copy(emb_hbm.at[ids_ref[base + r]],
                                  xbuf.at[r], sem.at[0]).start()

        @pl.loop(0, tm)
        def _drain(r):
            # Dummy source of matching shape; wait amount comes from the size.
            pltpu.make_async_copy(emb_hbm.at[0], xbuf.at[r], sem.at[0]).wait()

        # embed_dropout: configured off (dropout=None default) -> no-op.
        # TODO(synk): self.lm (the wrapped language-model module list) is
        # external/abstract in the spec; identity is used, so the Context
        # mask/head_mask/hidden/attention/cache plumbing is unused here.
        x = xbuf[...].astype(jnp.float32)

        # postnorm: LayerNorm((embed,)) in f32 (portable to v5e: no bf16 VPU).
        mu = jnp.mean(x, axis=-1, keepdims=True)
        var = jnp.mean(jnp.square(x - mu), axis=-1, keepdims=True)
        hn = (x - mu) * lax.rsqrt(var + EPS)
        hn = hn * prm_ref[0:1, :] + prm_ref[1:2, :]
        hbuf[...] = hn.astype(hbuf.dtype)   # cast once; reused for all vocab tiles

    # --- lm_head tile: (tm, E) x (E, tv) -> (tm, tv), f32 accumulation ------
    o_ref[...] = jnp.dot(hbuf[...], head_ref[...],
                         preferred_element_type=jnp.float32).astype(o_ref.dtype)


def language_model_forward(ids, embed_weight, head_weight, post_gamma, post_beta,
                           *, tm=256, tv=1024, use_bf16_matmul=True,
                           logits_dtype=jnp.bfloat16):
    """Fused LanguageModel forward.

    ids:          (B, S) int token ids.
    embed_weight: (vocab, embed) nn.Embedding weight (stays in HBM, row-gathered).
    head_weight:  (vocab, embed) lm_head weight (pass embed_weight for
                  tie_weights() semantics).
    post_gamma/post_beta: (embed,) postnorm LayerNorm affine params.
    Returns logits of shape (B, S, vocab) in `logits_dtype`.

    Note: the PyTorch spec writes `nn.Linear(vocab, embed, bias=False)` but ties
    its weight to the (vocab, embed) embedding matrix; implemented here as the
    standard embed->vocab projection with a (vocab, embed) weight.
    """
    B, S = ids.shape
    V, E = embed_weight.shape
    T = B * S

    compute_dtype = jnp.bfloat16 if use_bf16_matmul else jnp.float32

    # ---- token tiling; keep the token grid even (>=2) for v7x megacore -----
    tm = max(8, min(_ceil_to(tm, 8), _ceil_to(T, 8)))
    n_tok = _cdiv(T, tm)
    if n_tok % 2 == 1 and T > 8:
        tm = max(8, _ceil_to(_cdiv(T, n_tok + 1), 8))
        n_tok = _cdiv(T, tm)
    T_pad = n_tok * tm

    # ---- vocab tiling (lane-dense, multiple of 128) -------------------------
    V_pad = _ceil_to(V, 128)
    tv = max(128, min(_ceil_to(tv, 128), V_pad))
    V_pad = _ceil_to(V_pad, tv)
    n_voc = V_pad // tv

    # ---- inputs --------------------------------------------------------------
    # Clamp ids: out-of-range ids would otherwise become unchecked OOB DMAs.
    ids_flat = jnp.clip(ids.reshape(T), 0, V - 1).astype(jnp.int32)
    if T_pad != T:
        # Padded tail tokens gather row 0 and are sliced off after the call.
        ids_flat = jnp.pad(ids_flat, (0, T_pad - T))

    emb_hbm = embed_weight                         # HBM-resident, gathered by row

    # One-time transpose + cast of the lm_head weight: (E, V) compute_dtype.
    head_t = head_weight.astype(compute_dtype).T
    if V_pad != V:
        head_t = jnp.pad(head_t, ((0, 0), (0, V_pad - V)))

    # LayerNorm affine params packed into one sublane-aligned (8, E) slab:
    # row 0 = gamma, row 1 = beta.
    params = jnp.zeros((8, E), jnp.float32)
    params = params.at[0].set(post_gamma.astype(jnp.float32))
    params = params.at[1].set(post_beta.astype(jnp.float32))

    # ---- specs ---------------------------------------------------------------
    emb_spec = pl.BlockSpec(memory_space=pl.ANY)                     # raw HBM ref
    head_spec = pl.BlockSpec((E, tv), lambda i, j, ids: (0, j))
    prm_spec = pl.BlockSpec((8, E), lambda i, j, ids: (0, 0))
    out_spec = pl.BlockSpec((tm, tv), lambda i, j, ids: (i, j))      # lane-dense

    scratch = [
        pltpu.VMEM((tm, E), embed_weight.dtype),   # gathered embedding rows
        pltpu.VMEM((tm, E), compute_dtype),        # post-LayerNorm activations
        pltpu.SemaphoreType.DMA((1,)),             # gather completion sem
    ]

    head_bytes = jnp.dtype(compute_dtype).itemsize
    emb_bytes = jnp.dtype(embed_weight.dtype).itemsize
    out_bytes = jnp.dtype(logits_dtype).itemsize

    cost = pl.CostEstimate(
        flops=int(2 * T_pad * E * V_pad + 10 * T_pad * E),
        transcendentals=int(T_pad),
        bytes_accessed=int(4 * T_pad                      # ids (SMEM prefetch)
                           + emb_bytes * T_pad * E        # row gather
                           + head_bytes * E * V_pad * n_tok  # head re-read / tile
                           + 4 * 8 * E                    # LN params
                           + out_bytes * T_pad * V_pad),  # logits writeback
    )

    vmem_need = (2 * E * tv * head_bytes          # head block, double-buffered
                 + 2 * tm * tv * out_bytes        # output block, double-buffered
                 + 2 * 8 * E * 4                  # params block
                 + tm * E * emb_bytes             # gather scratch
                 + tm * E * head_bytes)           # normalized-activation scratch
    vmem_limit = int(min(64 * 1024 * 1024, max(3 * vmem_need, 16 * 1024 * 1024)))

    out2d = pl.pallas_call(
        _lm_kernel,
        out_shape=jax.ShapeDtypeStruct((T_pad, V_pad), logits_dtype),
        grid_spec=pltpu.PrefetchScalarGridSpec(
            num_scalar_prefetch=1,                 # token ids -> SMEM
            grid=(n_tok, n_voc),
            in_specs=[emb_spec, head_spec, prm_spec],
            out_specs=out_spec,
            scratch_shapes=scratch),
        compiler_params=pltpu.CompilerParams(
            # token axis shards across TCs on v7x; vocab axis must stay
            # sequential (per-token-tile gather/LayerNorm happens at j == 0).
            dimension_semantics=("parallel", "arbitrary"),
            vmem_limit_bytes=vmem_limit),
        cost_estimate=cost,
    )(ids_flat, emb_hbm, head_t, params)

    return out2d[:T, :V].reshape(B, S, V)


def _reference(ids, embed_weight, head_weight, post_gamma, post_beta,
               *, use_bf16_matmul=True):
    x = embed_weight[ids].astype(jnp.float32)                # embedding lookup
    mu = jnp.mean(x, axis=-1, keepdims=True)
    var = jnp.mean(jnp.square(x - mu), axis=-1, keepdims=True)
    h = (x - mu) * lax.rsqrt(var + EPS) * post_gamma + post_beta
    dt = jnp.bfloat16 if use_bf16_matmul else jnp.float32
    return lax.dot_general(h.astype(dt), head_weight.astype(dt),
                           dimension_numbers=(((2,), (1,)), ((), ())),
                           preferred_element_type=jnp.float32)


if __name__ == "__main__":
    VOCAB, EMBED = 512, 128
    B, S = 4, 128                      # T = 512 tokens -> token grid = (2,)
    key = jax.random.PRNGKey(0)
    k_ids, k_emb, k_g, k_b = jax.random.split(key, 4)

    ids = jax.random.randint(k_ids, (B, S), 0, VOCAB, dtype=jnp.int32)
    emb_w = jax.random.normal(k_emb, (VOCAB, EMBED), dtype=jnp.float32) * 0.02
    head_w = emb_w                      # tie_weights(): lm_head.weight = embed.weight
    post_g = 1.0 + 0.1 * jax.random.normal(k_g, (EMBED,), dtype=jnp.float32)
    post_b = 0.1 * jax.random.normal(k_b, (EMBED,), dtype=jnp.float32)

    # tv=256 so the demo exercises the vocab grid axis (grid = (2, 2)).
    out = language_model_forward(ids, emb_w, head_w, post_g, post_b, tv=256)
    out = jax.block_until_ready(out)

    ref = _reference(ids, emb_w, head_w, post_g, post_b)
    assert out.shape == (B, S, VOCAB)
    assert jnp.allclose(out.astype(jnp.float32), ref, atol=2e-2, rtol=2e-2), \
        "mismatch vs reference"

    print("KERNEL_OK")
</pallas_src>

<mosaic_0001>
module attributes {stable_mosaic.version = 11 : i64} {
  func.func @_lm_kernel(%arg0: i32, %arg1: i32, %arg2: memref<512xi32, #tpu.memory_space<smem>>, %arg3: memref<512x128xf32, #tpu.memory_space<any>>, %arg4: memref<128x256xbf16, #tpu.memory_space<vmem>>, %arg5: memref<8x128xf32, #tpu.memory_space<vmem>>, %arg6: memref<256x256xbf16, #tpu.memory_space<vmem>>, %arg7: memref<256x128xf32, #tpu.memory_space<vmem>>, %arg8: memref<256x128xbf16, #tpu.memory_space<vmem>>, %arg9: memref<1x!tpu.dma_semaphore, #tpu.memory_space<semaphore_mem>>) attributes {dimension_semantics = [#tpu.dimension_semantics<parallel>, #tpu.dimension_semantics<arbitrary>], iteration_bounds = array<i64: 2, 2>, scalar_prefetch = 1 : i64, scratch_operands = 3 : i64, tpu.core_type = #tpu.core_type<tc>, window_params = [{}, {transform_indices = @transform_1, window_bounds = array<i64: 128, 256>}, {pipeline_mode = #tpu.pipeline_mode<synchronous>, transform_indices = @transform_2, window_bounds = array<i64: 8, 128>}, {transform_indices = @transform_3, window_bounds = array<i64: 256, 256>}]} {
    %c0_i32 = arith.constant 0 : i32
    %0 = arith.cmpi eq, %arg1, %c0_i32 : i32
    %1 = arith.extui %0 : i1 to i32
    %c0_i32_0 = arith.constant 0 : i32
    %2 = arith.cmpi ne, %1, %c0_i32_0 : i32
    scf.if %2 {
      %c256_i32 = arith.constant 256 : i32
      %8 = arith.muli %arg0, %c256_i32 : i32
      %c0_i32_6 = arith.constant 0 : i32
      %c256_i32_7 = arith.constant 256 : i32
      %9 = arith.addi %c0_i32_6, %c256_i32_7 : i32
      %c1_i32 = arith.constant 1 : i32
      scf.for %arg10 = %c0_i32_6 to %9 step %c1_i32  : i32 {
        %c1_i32_25 = arith.constant 1 : i32
        %38 = arith.muli %arg10, %c1_i32_25 : i32
        %c0_i32_26 = arith.constant 0 : i32
        %39 = arith.addi %c0_i32_26, %38 : i32
        %40 = arith.addi %8, %39 : i32
        %41 = arith.index_cast %40 : i32 to index
        %42 = memref.load %arg2[%41] : memref<512xi32, #tpu.memory_space<smem>>
        %c0_i32_27 = arith.constant 0 : i32
        %c0_i32_28 = arith.constant 0 : i32
        %43 = tpu.memref_slice %arg3[%42, %c0_i32_28] : memref<512x128xf32, #tpu.memory_space<any>> -> memref<1x128xf32, #tpu.memory_space<any>>
        %44 = tpu.memref_squeeze %43 : memref<1x128xf32, #tpu.memory_space<any>> -> memref<128xf32, #tpu.memory_space<any>>
        %c0_i32_29 = arith.constant 0 : i32
        %45 = tpu.memref_slice %arg7[%39, %c0_i32_29] : memref<256x128xf32, #tpu.memory_space<vmem>> -> memref<1x128xf32, #tpu.memory_space<vmem>>
        %46 = tpu.memref_squeeze %45 : memref<1x128xf32, #tpu.memory_space<vmem>> -> memref<128xf32, #tpu.memory_space<vmem>>
        %47 = tpu.memref_slice %arg9[%c0_i32_27] : memref<1x!tpu.dma_semaphore, #tpu.memory_space<semaphore_mem>> -> memref<1x!tpu.dma_semaphore, #tpu.memory_space<semaphore_mem>>
        %48 = tpu.memref_squeeze %47 : memref<1x!tpu.dma_semaphore, #tpu.memory_space<semaphore_mem>> -> memref<!tpu.dma_semaphore, #tpu.memory_space<semaphore_mem>>
        tpu.enqueue_dma source(%44 : memref<128xf32, #tpu.memory_space<any>>) target(%46 : memref<128xf32, #tpu.memory_space<vmem>>) target_semaphore(%48 : memref<!tpu.dma_semaphore, #tpu.memory_space<semaphore_mem>>)
      }
      %c256_i32_8 = arith.constant 256 : i32
      %c0_i32_9 = arith.constant 0 : i32
      %c256_i32_10 = arith.constant 256 : i32
      %10 = arith.addi %c0_i32_9, %c256_i32_10 : i32
      %c1_i32_11 = arith.constant 1 : i32
      scf.for %arg10 = %c0_i32_9 to %10 step %c1_i32_11  : i32 {
        %c1_i32_25 = arith.constant 1 : i32
        %38 = arith.muli %arg10, %c1_i32_25 : i32
        %c0_i32_26 = arith.constant 0 : i32
        %39 = arith.addi %c0_i32_26, %38 : i32
        %c0_i32_27 = arith.constant 0 : i32
        %c0_i32_28 = arith.constant 0 : i32
        %c0_i32_29 = arith.constant 0 : i32
        %40 = tpu.memref_slice %arg3[%c0_i32_27, %c0_i32_29] : memref<512x128xf32, #tpu.memory_space<any>> -> memref<1x128xf32, #tpu.memory_space<any>>
        %41 = tpu.memref_squeeze %40 : memref<1x128xf32, #tpu.memory_space<any>> -> memref<128xf32, #tpu.memory_space<any>>
        %c0_i32_30 = arith.constant 0 : i32
        %42 = tpu.memref_slice %arg7[%39, %c0_i32_30] : memref<256x128xf32, #tpu.memory_space<vmem>> -> memref<1x128xf32, #tpu.memory_space<vmem>>
        %43 = tpu.memref_squeeze %42 : memref<1x128xf32, #tpu.memory_space<vmem>> -> memref<128xf32, #tpu.memory_space<vmem>>
        %44 = tpu.memref_slice %arg9[%c0_i32_28] : memref<1x!tpu.dma_semaphore, #tpu.memory_space<semaphore_mem>> -> memref<1x!tpu.dma_semaphore, #tpu.memory_space<semaphore_mem>>
        %45 = tpu.memref_squeeze %44 : memref<1x!tpu.dma_semaphore, #tpu.memory_space<semaphore_mem>> -> memref<!tpu.dma_semaphore, #tpu.memory_space<semaphore_mem>>
        tpu.wait_dma2 semaphore(%45 : memref<!tpu.dma_semaphore, #tpu.memory_space<semaphore_mem>>) src(%41 : memref<128xf32, #tpu.memory_space<any>>) dst(%43 : memref<128xf32, #tpu.memory_space<vmem>>)
      }
      %c256_i32_12 = arith.constant 256 : i32
      %c0_13 = arith.constant 0 : index
      %c0_14 = arith.constant 0 : index
      %11 = vector.load %arg7[%c0_13, %c0_14] : memref<256x128xf32, #tpu.memory_space<vmem>>, vector<256x128xf32>
      %cst_15 = arith.constant dense<0.000000e+00> : vector<256xf32>
      %12 = vector.multi_reduction <add>, %11, %cst_15 [1] : vector<256x128xf32> to vector<256xf32>
      %13 = vector.shape_cast %12 : vector<256xf32> to vector<256x1xf32>
      %cst_16 = arith.constant 1.280000e+02 : f32
      %14 = vector.broadcast %cst_16 : f32 to vector<256x1xf32>
      %15 = arith.divf %13, %14 : vector<256x1xf32>
      %16 = vector.broadcast %15 : vector<256x1xf32> to vector<256x128xf32>
      %17 = arith.subf %11, %16 : vector<256x128xf32>
      %18 = arith.mulf %17, %17 : vector<256x128xf32>
      %cst_17 = arith.constant dense<0.000000e+00> : vector<256xf32>
      %19 = vector.multi_reduction <add>, %18, %cst_17 [1] : vector<256x128xf32> to vector<256xf32>
      %20 = vector.shape_cast %19 : vector<256xf32> to vector<256x1xf32>
      %cst_18 = arith.constant 1.280000e+02 : f32
      %21 = vector.broadcast %cst_18 : f32 to vector<256x1xf32>
      %22 = arith.divf %20, %21 : vector<256x1xf32>
      %23 = vector.broadcast %15 : vector<256x1xf32> to vector<256x128xf32>
      %24 = arith.subf %11, %23 : vector<256x128xf32>
      %cst_19 = arith.constant 9.99999974E-6 : f32
      %25 = vector.broadcast %cst_19 : f32 to vector<256x1xf32>
      %26 = arith.addf %22, %25 : vector<256x1xf32>
      %27 = math.rsqrt %26 : vector<256x1xf32>
      %28 = vector.broadcast %27 : vector<256x1xf32> to vector<256x128xf32>
      %29 = arith.mulf %24, %28 : vector<256x128xf32>
      %c0_20 = arith.constant 0 : index
      %c0_21 = arith.constant 0 : index
      %30 = vector.load %arg5[%c0_20, %c0_21] : memref<8x128xf32, #tpu.memory_space<vmem>>, vector<1x128xf32>
      %31 = vector.broadcast %30 : vector<1x128xf32> to vector<256x128xf32>
      %32 = arith.mulf %29, %31 : vector<256x128xf32>
      %c1 = arith.constant 1 : index
      %c0_22 = arith.constant 0 : index
      %33 = vector.load %arg5[%c1, %c0_22] : memref<8x128xf32, #tpu.memory_space<vmem>>, vector<1x128xf32>
      %34 = vector.broadcast %33 : vector<1x128xf32> to vector<256x128xf32>
      %35 = arith.addf %32, %34 : vector<256x128xf32>
      %36 = arith.truncf %35 : vector<256x128xf32> to vector<256x128xbf16>
      %c0_23 = arith.constant 0 : index
      %c0_24 = arith.constant 0 : index
      %37 = vector.load %arg8[%c0_23, %c0_24] : memref<256x128xbf16, #tpu.memory_space<vmem>>, vector<256x128xbf16>
      tpu.vector_store %arg8[%c0_23, %c0_24], %36 {strides = array<i32>} : memref<256x128xbf16, #tpu.memory_space<vmem>>, vector<256x128xbf16>,
    } else {
    }
    %c0 = arith.constant 0 : index
    %c0_1 = arith.constant 0 : index
    %3 = vector.load %arg8[%c0, %c0_1] : memref<256x128xbf16, #tpu.memory_space<vmem>>, vector<256x128xbf16>
    %c0_2 = arith.constant 0 : index
    %c0_3 = arith.constant 0 : index
    %4 = vector.load %arg4[%c0_2, %c0_3] : memref<128x256xbf16, #tpu.memory_space<vmem>>, vector<128x256xbf16>
    %cst = arith.constant dense<0.000000e+00> : vector<256x256xf32>
    %5 = tpu.matmul %3, %4, %cst {dimension_numbers = #tpu.dot_dimension_numbers<[1], [0], [0], [1], [0, 0, 1, 1], [], []>} : vector<256x128xbf16>, vector<128x256xbf16>, vector<256x256xf32> -> vector<256x256xf32>
    %6 = arith.truncf %5 : vector<256x256xf32> to vector<256x256xbf16>
    %c0_4 = arith.constant 0 : index
    %c0_5 = arith.constant 0 : index
    %7 = vector.load %arg6[%c0_4, %c0_5] : memref<256x256xbf16, #tpu.memory_space<vmem>>, vector<256x256xbf16>
    tpu.vector_store %arg6[%c0_4, %c0_5], %6 {strides = array<i32>} : memref<256x256xbf16, #tpu.memory_space<vmem>>, vector<256x256xbf16>,
    return
  }
  func.func @transform_1(%arg0: i32, %arg1: i32, %arg2: memref<512xi32, #tpu.memory_space<smem>>) -> (i32, i32) {
    %c0_i32 = arith.constant 0 : i32
    %c0_i32_0 = arith.constant 0 : i32
    return %c0_i32, %arg1 : i32, i32
  }
  func.func @transform_2(%arg0: i32, %arg1: i32, %arg2: memref<512xi32, #tpu.memory_space<smem>>) -> (i32, i32) {
    %c0_i32 = arith.constant 0 : i32
    %c0_i32_0 = arith.constant 0 : i32
    %c0_i32_1 = arith.constant 0 : i32
    return %c0_i32, %c0_i32_0 : i32, i32
  }
  func.func @transform_3(%arg0: i32, %arg1: i32, %arg2: memref<512xi32, #tpu.memory_space<smem>>) -> (i32, i32) {
    %c0_i32 = arith.constant 0 : i32
    return %arg0, %arg1 : i32, i32
  }
}

</mosaic_0001>

<llo_original>
// kernel: tpu_custom_call.1
$region0: #{tpu_custom_call.1}
  #allocation0 [shape = 'u32[]', space=smem, size = 0x4, offset = 0x4, fixed_abs, tag = 'smem constant byte address 0x4 - core index']
  #allocation1 [shape = 'u32[144,128]{1,0:T(1,128)}', space=vmem, size = 0x12000, scoped, tag = 'internal scratch']
  #allocation2 [shape = 'f32[256,128]{1,0:T(8,128)}', space=vmem, size = 0x20000, scoped, tag = 'scratch operand']
  #allocation3 [shape = 'bf16[256,128]{1,0:T(8,128)(2,1)}', space=vmem, size = 0x10000, scoped, tag = 'scratch operand']
  #allocation4 [shape = 's32[1]{0}', space=sflag, size = 0x4, scoped, tag = 'scratch operand']
  #allocation5 [shape = 's32[1]{0}', space=sflag, size = 0x4, scoped, tag = 'scoped memory for tpu_custom_call.1']
  #allocation6 [shape = 'u8[2048]{0}', space=smem, size = 0x800, scoped, tag = 'prefetched SMEM operand 0']
  #allocation13 [shape = 's32[]', space=sflag, size = 0x4, offset = 0, fixed_abs, tag = 'sflag constant byte address 0x0 - dummy sync flag']
  #allocation14 [shape = 's32[]', space=sflag, size = 0x4, offset = 0, fixed_abs, tag = 'sflag constant byte address 0x0 - dummy sync flag']
  #allocation15 [shape = 'u32[]', space=smem, size = 0x4, offset = 0x44, fixed_abs, tag = 'smem constant byte address 0x44 - assertion arg 0']
  #allocation16 [shape = 'u32[]', space=smem, size = 0x4, offset = 0x48, fixed_abs, tag = 'smem constant byte address 0x48 - assertion arg 1']
  %s0 = inlined_call_operand.hbm [shape: s32[512], index: 0, kind: input, shape index: {}]
  %s1 = inlined_call_operand.hbm [shape: f32[512,128], index: 1, kind: input, shape index: {}]
  %s2 = inlined_call_operand.hbm [shape: bf16[128,512], index: 2, kind: input, shape index: {}]
  %s3 = inlined_call_operand.hbm [shape: f32[8,128], index: 3, kind: input, shape index: {}]
  %s4 = inlined_call_operand.hbm [shape: bf16[512,512], index: 4, kind: output, shape index: {}]
  %s5 = sld [smem:[#allocation0]]
  $region71: #{tpu_custom_call.1} parent=0
    _
  %s7 = ssub.s32 1, %s5
  %s8 = scalar_select 0, %s7, %s5
  %10 = dma.hbm_to_smem %s0, 64, [#allocation6], [#allocation5]
  %11 = dma.done [#allocation5], 64
  %12 = sfence
  $region1: #{tpu_custom_call.1} parent=0
    #allocation7 [shape = 'u8[131072]{0}', space=vmem, size = 0x20000, scoped, tag = 'input window, operand 2']
    #allocation8 [shape = 's32[2]{0}', space=sflag, size = 0x8, scoped, tag = 'scoped memory for tpu_custom_call.1']
    #allocation9 [shape = 's32[2]{0}', space=sflag, size = 0x8, scoped, tag = 'scoped memory for tpu_custom_call.1']
    #allocation10 [shape = 'u8[4096]{0}', space=vmem, size = 0x1000, scoped, tag = 'input window, operand 3, single buffered']
    #allocation11 [shape = 's32[1]{0}', space=sflag, size = 0x4, scoped, tag = 'scoped memory for tpu_custom_call.1']
    #allocation12 [shape = 'u8[262144]{0}', space=vmem, size = 0x40000, scoped, tag = 'output window, operand 0']
    %13 = vsyncpa [#allocation8], 0
    %s14 = scalar_lea.sflag [#allocation8], 1
    %15 = vsyncpa %s14, 0
    %16 = vsyncpa [#allocation11], 0
    %17 = vsyncpa [#allocation9], 0
    %s18 = scalar_lea.sflag [#allocation9], 1
    %19 = vsyncpa %s18, 0
    loop: start=0, step=1, limit=6
    $region2: #{tpu_custom_call.1} parent=1 // loop_pre_header
      _
    $region3: #{tpu_custom_call.1} parent=1 // loop_header
      %s21 = sphi 0, %s25
      %p22 = scmp.ge.s32.totalorder %s21, 6
      %s28 = sphi 0, %s40
      %s29 = sphi 0, %s36
      %s30 = sphi 0, %s28
      %s31 = sphi 0, %s29
      %s32 = sphi 0, %s30
      %s33 = sphi 0, %s31
      %s43 = sphi 0, %s45
      %s46 = sphi 0, %s43
      %s47 = sphi 0, %s46
      %s63 = sphi 0, %s47
      %s67 = sphi 0, %s67
      %s69 = sphi 0, %s67
      %s70 = sphi 0, %s69
      %s84 = sphi 0, %s70
      %s92 = sphi 0, %s94
      %s95 = sphi 0, %s92
      %s96 = sphi 0, %s95
      %s112 = sphi 0, %s96
    $region4: #{tpu_custom_call.1} parent=1 // loop_header_branch
      %24 = sbr.rel (%p22) target = $region8
    $region5: #{tpu_custom_call.1} parent=1 // loop_body
      %s26 = ssub.s32 %s21, 1
      %s27 = ssub.s32 %s21, 2
      %s34 = sadd.s32 1, %s29
      %p35 = scmp.ge.s32.totalorder %s34, 2
      %s36 = scalar_select %p35, 0, %s34
      %s37 = sadd.s32 1, %s28
      %s38 = scalar_select %p35, %s37, %s28
      %p39 = scmp.ge.s32.totalorder %s38, 2
      %s40 = scalar_select %p39, 0, %s38
      %s41 = ssub.s32 %s29, %s36
      %p42 = scmp.eq.s32.totalorder %s41, 0
      %s44 = sadd.s32 %s43, 1
      %s45 = scalar_select %p42, %s43, %s44
      %p48 = pneg %p42
      %p49 = scmp.eq.s32.totalorder %s21, 3
      %p50 = por %p48, %p49
      %p51 = scmp.ne.s32.totalorder %s43, %s46
      %p52 = scmp.eq.s32.totalorder %s21, 0
      %p53 = por %p51, %p52
      %p54 = scmp.ne.s32.totalorder %s43, %s46
      %p55 = scmp.eq.s32.totalorder %s26, 3
      %p56 = por %p54, %p55
      %p57 = scmp.ne.s32.totalorder %s46, %s47
      %p58 = scmp.eq.s32.totalorder %s26, 0
      %p59 = por %p57, %p58
      %p60 = scmp.ne.s32.totalorder %s46, %s47
      %p61 = scmp.eq.s32.totalorder %s27, 3
      %p62 = por %p60, %p61
      %p64 = scmp.ne.s32.totalorder %s47, %s63
      %p65 = scmp.eq.s32.totalorder %s27, 0
      %p66 = por %p64, %p65
      %s68 = sadd.s32 %s67, 1
      %p71 = scmp.eq.s32.totalorder %s21, 3
      %p72 = scmp.ne.s32.totalorder %s67, %s69
      %p73 = scmp.eq.s32.totalorder %s21, 0
      %p74 = por %p72, %p73
      %p75 = scmp.ne.s32.totalorder %s67, %s69
      %p76 = scmp.eq.s32.totalorder %s26, 3
      %p77 = por %p75, %p76
      %p78 = scmp.ne.s32.totalorder %s69, %s70
      %p79 = scmp.eq.s32.totalorder %s26, 0
      %p80 = por %p78, %p79
      %p81 = scmp.ne.s32.totalorder %s69, %s70
      %p82 = scmp.eq.s32.totalorder %s27, 3
      %p83 = por %p81, %p82
      %p85 = scmp.ne.s32.totalorder %s70, %s84
      %p86 = scmp.eq.s32.totalorder %s27, 0
      %p87 = por %p85, %p86
      %s88 = ssub.s32 %s28, %s40
      %s89 = ssub.s32 %s29, %s36
      %s90 = sor.u32 %s88, %s89
      %p91 = scmp.eq.s32.totalorder %s90, 0
      %s93 = sadd.s32 %s92, 1
      %s94 = scalar_select %p91, %s92, %s93
      %p97 = pneg %p91
      %p98 = scmp.eq.s32.totalorder %s21, 3
      %p99 = por %p97, %p98
      %p100 = scmp.ne.s32.totalorder %s92, %s95
      %p101 = scmp.eq.s32.totalorder %s21, 0
      %p102 = por %p100, %p101
      %p103 = scmp.ne.s32.totalorder %s92, %s95
      %p104 = scmp.eq.s32.totalorder %s26, 3
      %p105 = por %p103, %p104
      %p106 = scmp.ne.s32.totalorder %s95, %s96
      %p107 = scmp.eq.s32.totalorder %s26, 0
      %p108 = por %p106, %p107
      %p109 = scmp.ne.s32.totalorder %s95, %s96
      %p110 = scmp.eq.s32.totalorder %s27, 3
      %p111 = por %p109, %p110
      %p113 = scmp.ne.s32.totalorder %s96, %s112
      %p114 = scmp.eq.s32.totalorder %s27, 0
      %p115 = por %p113, %p114
      %p116 = scmp.le.s32.totalorder 1, %s21
      %p117 = scmp.lt.s32.totalorder %s21, 5
      %p118 = pnand %p116, %p117
      %p119 = pneg %p118
      // Predicated region
      $region9: #{tpu_custom_call.1} parent=5 // pred_check
        _
      $region10: #{tpu_custom_call.1} parent=5 // pred_check_branch
        %121 = sbr.rel (%p118) target = $region12
      $region11: #{tpu_custom_call.1} parent=5 // pred_region
        %s122 = ssub.s32 %s21, 1
        // Predicated region
        $region13: #{tpu_custom_call.1} parent=11 // pred_check
          %p123 = pneg %p80
        $region14: #{tpu_custom_call.1} parent=11 // pred_check_branch
          %125 = sbr.rel (%p123) target = $region16
        $region15: #{tpu_custom_call.1} parent=11 // pred_region
          %s127 = ssub.s32 128, 128
          %128 = vsyncadd [#allocation11], %s127
          %s130 = sshll.u32 [#allocation10], 4
          %s131 = int_to_ptr.vmem [resolvable:$true] %s130
          %133 = dma.hbm_to_vmem [thread:$0]  %s3, 128, %s131, [#allocation11]
        $region16: #{tpu_custom_call.1} parent=11 // pred_fallthru
          _
      $region12: #{tpu_custom_call.1} parent=5 // pred_fallthru
        _
      %p134 = scmp.lt.s32.totalorder %s21, 4
      // Predicated region
      $region17: #{tpu_custom_call.1} parent=5 // pred_check
        %p135 = pneg %p134
      $region18: #{tpu_custom_call.1} parent=5 // pred_check_branch
        %137 = sbr.rel (%p135) target = $region20
      $region19: #{tpu_custom_call.1} parent=5 // pred_region
        // Predicated region
        $region21: #{tpu_custom_call.1} parent=19 // pred_check
          %p138 = pneg %p53
        $region22: #{tpu_custom_call.1} parent=19 // pred_check_branch
          %140 = sbr.rel (%p138) target = $region24
        $region23: #{tpu_custom_call.1} parent=19 // pred_region
          %s141 = sand.u32 %s43, 1
          %s142 = scalar_lea.sflag [#allocation8], %s141
          %s143 = sand.u32 %s43, 1
          %s144 = smul.addr %s143, 128
          %s145 = scalar_lea.vmem [#allocation7], %s144
          %s146 = smul.u32 2, %s29
          %s148 = ssub.s32 2048, 2048
          %149 = vsyncadd %s142, %s148
          %s150 = smul.addr %s146, 64
          %s151 = scalar_lea.hbm %s2, %s150
          %s152 = sshll.u32 %s145, 4
          %s153 = int_to_ptr.vmem [resolvable:$true] %s152
          %158 = dma.hbm_to_vmem [thread:$0]  %s151, 2048, %s153, %s142, 256, 128, 8
        $region24: #{tpu_custom_call.1} parent=19 // pred_fallthru
          _
      $region20: #{tpu_custom_call.1} parent=5 // pred_fallthru
        _
      %p159 = scmp.le.s32.totalorder 1, %s21
      %p160 = scmp.lt.s32.totalorder %s21, 5
      %p161 = pnand %p159, %p160
      %p162 = pneg %p161
      // Predicated region
      $region25: #{tpu_custom_call.1} parent=5 // pred_check
        _
      $region26: #{tpu_custom_call.1} parent=5 // pred_check_branch
        %164 = sbr.rel (%p161) target = $region28
      $region27: #{tpu_custom_call.1} parent=5 // pred_region
        %s165 = ssub.s32 %s21, 1
        %s166 = sand.u32 %s46, 1
        %s167 = scalar_lea.sflag [#allocation8], %s166
        %s168 = sand.u32 %s46, 1
        %s169 = smul.addr %s168, 128
        %s170 = scalar_lea.vmem [#allocation7], %s169
        // Predicated region
        $region29: #{tpu_custom_call.1} parent=27 // pred_check
          %p171 = pneg %p59
        $region30: #{tpu_custom_call.1} parent=27 // pred_check_branch
          %173 = sbr.rel (%p171) target = $region32
        $region31: #{tpu_custom_call.1} parent=27 // pred_region
          %174 = dma.done %s167, 2048
        $region32: #{tpu_custom_call.1} parent=27 // pred_fallthru
          _
        // Predicated region
        $region33: #{tpu_custom_call.1} parent=27 // pred_check
          %p175 = pneg %p80
        $region34: #{tpu_custom_call.1} parent=27 // pred_check_branch
          %177 = sbr.rel (%p175) target = $region36
        $region35: #{tpu_custom_call.1} parent=27 // pred_region
          %178 = dma.done [#allocation11], 128
        $region36: #{tpu_custom_call.1} parent=27 // pred_fallthru
          _
        %s179 = sand.u32 %s46, 1
        %s180 = scalar_lea.sflag [#allocation8], %s179
        %s181 = sand.u32 %s46, 1
        %s182 = smul.addr %s181, 128
        %s183 = scalar_lea.vmem [#allocation7], %s182
        %p184 = pneg %p59
        %p185 = pneg %p56
        %p186 = pneg %p80
        %p187 = pneg %p77
        %p188 = pneg %p108
        %p189 = pneg %p105
        %s190 = sand.u32 %s95, 1
        %s191 = scalar_lea.sflag [#allocation9], %s190
        %s192 = sand.u32 %s95, 1
        %s193 = smul.addr %s192, 256
        %s194 = scalar_lea.vmem [#allocation12], %s193
        %s195 = smul.u32 2, %s31
        %s196 = smul.u32 32, %s30
        %s197 = smul.u32 2, %s31
        %p199 = scmp.eq.s32.totalorder %s31, 0
        // Predicated region
        $region37: #{tpu_custom_call.1} parent=27 // pred_check
          %p200 = pneg %p199
        $region38: #{tpu_custom_call.1} parent=27 // pred_check_branch
          %202 = sbr.rel (%p200) target = $region40
        $region39: #{tpu_custom_call.1} parent=27 // pred_region
          %s203 = smul.u32 %s30, 256
          loop: start=0, step=1, limit=256
          $region41: #{tpu_custom_call.1} parent=39 // loop_pre_header
            _
          $region42: #{tpu_custom_call.1} parent=39 // loop_header
            %s205 = sphi 0, %s209
            %p206 = scmp.ge.s32.totalorder %s205, 256
          $region43: #{tpu_custom_call.1} parent=39 // loop_header_branch
            %208 = sbr.rel (%p206) target = $region47
          $region44: #{tpu_custom_call.1} parent=39 // loop_body
            %s210 = sadd.s32 %s203, %s205
            %s211 = sld [smem:[#allocation6 + %s210]]
            %s212 = smul.addr %s211, 16
            %s213 = scalar_lea.hbm %s1, %s212
            %s214 = scalar_lea.vmem [#allocation2], %s205
            // Predicated region
            $region48: #{tpu_custom_call.1} parent=44 // pred_check
              _
            $region49: #{tpu_custom_call.1} parent=44 // pred_check_branch
              %216 = sbr.rel target = $region51
            $region50: #{tpu_custom_call.1} parent=44 // pred_region
              %217 = sst [smem:[#allocation15]] [#allocation14]
              %218 = sst [smem:[#allocation16]] [#allocation13]
            $region51: #{tpu_custom_call.1} parent=44 // pred_fallthru
              _
            %220 = shalt.err (0)
            %s222 = sshll.u32 %s214, 4
            %s223 = int_to_ptr.vmem [resolvable:$true] %s222
            %225 = dma.hbm_to_vmem [thread:$0]  %s213, 16, %s223, [#allocation4]
          $region45: #{tpu_custom_call.1} parent=39 // loop_footer
            %s209 = sadd.s32 1, %s205
          $region46: #{tpu_custom_call.1} parent=39 // loop_footer_branch
            %204 = sbr.rel target = $region42
          $region47: #{tpu_custom_call.1} parent=39 // loop_exit
            _
          loop: start=0, step=1, limit=256
          $region52: #{tpu_custom_call.1} parent=39 // loop_pre_header
            _
          $region53: #{tpu_custom_call.1} parent=39 // loop_header
            %s227 = sphi 0, %s231
            %p228 = scmp.ge.s32.totalorder %s227, 256
          $region54: #{tpu_custom_call.1} parent=39 // loop_header_branch
            %230 = sbr.rel (%p228) target = $region58
          $region55: #{tpu_custom_call.1} parent=39 // loop_body
            %233 = dma.done [#allocation4], 16
          $region56: #{tpu_custom_call.1} parent=39 // loop_footer
            %s231 = sadd.s32 1, %s227
          $region57: #{tpu_custom_call.1} parent=39 // loop_footer_branch
            %226 = sbr.rel target = $region53
          $region58: #{tpu_custom_call.1} parent=39 // loop_exit
            _
          %v234 = vld [vmem:[#allocation2] sm:$0xff]
          %v235 = vld [vmem:[#allocation2 + $0x8] sm:$0xff]
          %v236 = vld [vmem:[#allocation2 + $0x10] sm:$0xff]
          %v237 = vld [vmem:[#allocation2 + $0x18] sm:$0xff]
          %v238 = vld [vmem:[#allocation2 + $0x20] sm:$0xff]
          %v239 = vld [vmem:[#allocation2 + $0x28] sm:$0xff]
          %v240 = vld [vmem:[#allocation2 + $0x30] sm:$0xff]
          %v241 = vld [vmem:[#allocation2 + $0x38] sm:$0xff]
          %v242 = vld [vmem:[#allocation2 + $0x40] sm:$0xff]
          %v243 = vld [vmem:[#allocation2 + $0x48] sm:$0xff]
          %v244 = vld [vmem:[#allocation2 + $0x50] sm:$0xff]
          %v245 = vld [vmem:[#allocation2 + $0x58] sm:$0xff]
          %v246 = vld [vmem:[#allocation2 + $0x60] sm:$0xff]
          %v247 = vld [vmem:[#allocation2 + $0x68] sm:$0xff]
          %v248 = vld [vmem:[#allocation2 + $0x70] sm:$0xff]
          %v249 = vld [vmem:[#allocation2 + $0x78] sm:$0xff]
          %v250 = vld [vmem:[#allocation2 + $0x80] sm:$0xff]
          %v251 = vld [vmem:[#allocation2 + $0x88] sm:$0xff]
          %v252 = vld [vmem:[#allocation2 + $0x90] sm:$0xff]
          %v253 = vld [vmem:[#allocation2 + $0x98] sm:$0xff]
          %v254 = vld [vmem:[#allocation2 + $0xa0] sm:$0xff]
          %v255 = vld [vmem:[#allocation2 + $0xa8] sm:$0xff]
          %v256 = vld [vmem:[#allocation2 + $0xb0] sm:$0xff]
          %v257 = vld [vmem:[#allocation2 + $0xb8] sm:$0xff]
          %v258 = vld [vmem:[#allocation2 + $0xc0] sm:$0xff]
          %v259 = vld [vmem:[#allocation2 + $0xc8] sm:$0xff]
          %v260 = vld [vmem:[#allocation2 + $0xd0] sm:$0xff]
          %v261 = vld [vmem:[#allocation2 + $0xd8] sm:$0xff]
          %v262 = vld [vmem:[#allocation2 + $0xe0] sm:$0xff]
          %v263 = vld [vmem:[#allocation2 + $0xe8] sm:$0xff]
          %v264 = vld [vmem:[#allocation2 + $0xf0] sm:$0xff]
          %v265 = vld [vmem:[#allocation2 + $0xf8] sm:$0xff]
          %266 = vadd.xlane.f32.xlu0 %v234
          %v267 = vpop.xlane.xlu0 %266
          %268 = vadd.xlane.f32.xlu0 %v235
          %v269 = vpop.xlane.xlu0 %268
          %270 = vadd.xlane.f32.xlu0 %v236
          %v271 = vpop.xlane.xlu0 %270
          %272 = vadd.xlane.f32.xlu0 %v237
          %v273 = vpop.xlane.xlu0 %272
          %274 = vadd.xlane.f32.xlu0 %v238
          %v275 = vpop.xlane.xlu0 %274
          %276 = vadd.xlane.f32.xlu0 %v239
          %v277 = vpop.xlane.xlu0 %276
          %278 = vadd.xlane.f32.xlu0 %v240
          %v279 = vpop.xlane.xlu0 %278
          %280 = vadd.xlane.f32.xlu0 %v241
          %v281 = vpop.xlane.xlu0 %280
          %282 = vadd.xlane.f32.xlu0 %v242
          %v283 = vpop.xlane.xlu0 %282
          %284 = vadd.xlane.f32.xlu0 %v243
          %v285 = vpop.xlane.xlu0 %284
          %286 = vadd.xlane.f32.xlu0 %v244
          %v287 = vpop.xlane.xlu0 %286
          %288 = vadd.xlane.f32.xlu0 %v245
          %v289 = vpop.xlane.xlu0 %288
          %290 = vadd.xlane.f32.xlu0 %v246
          %v291 = vpop.xlane.xlu0 %290
          %292 = vadd.xlane.f32.xlu0 %v247
          %v293 = vpop.xlane.xlu0 %292
          %294 = vadd.xlane.f32.xlu0 %v248
          %v295 = vpop.xlane.xlu0 %294
          %296 = vadd.xlane.f32.xlu0 %v249
          %v297 = vpop.xlane.xlu0 %296
          %298 = vadd.xlane.f32.xlu0 %v250
          %v299 = vpop.xlane.xlu0 %298
          %300 = vadd.xlane.f32.xlu0 %v251
          %v301 = vpop.xlane.xlu0 %300
          %302 = vadd.xlane.f32.xlu0 %v252
          %v303 = vpop.xlane.xlu0 %302
          %304 = vadd.xlane.f32.xlu0 %v253
          %v305 = vpop.xlane.xlu0 %304
          %306 = vadd.xlane.f32.xlu0 %v254
          %v307 = vpop.xlane.xlu0 %306
          %308 = vadd.xlane.f32.xlu0 %v255
          %v309 = vpop.xlane.xlu0 %308
          %310 = vadd.xlane.f32.xlu0 %v256
          %v311 = vpop.xlane.xlu0 %310
          %312 = vadd.xlane.f32.xlu0 %v257
          %v313 = vpop.xlane.xlu0 %312
          %314 = vadd.xlane.f32.xlu0 %v258
          %v315 = vpop.xlane.xlu0 %314
          %316 = vadd.xlane.f32.xlu0 %v259
          %v317 = vpop.xlane.xlu0 %316
          %318 = vadd.xlane.f32.xlu0 %v260
          %v319 = vpop.xlane.xlu0 %318
          %320 = vadd.xlane.f32.xlu0 %v261
          %v321 = vpop.xlane.xlu0 %320
          %322 = vadd.xlane.f32.xlu0 %v262
          %v323 = vpop.xlane.xlu0 %322
          %324 = vadd.xlane.f32.xlu0 %v263
          %v325 = vpop.xlane.xlu0 %324
          %326 = vadd.xlane.f32.xlu0 %v264
          %v327 = vpop.xlane.xlu0 %326
          %328 = vadd.xlane.f32.xlu0 %v265
          %v329 = vpop.xlane.xlu0 %328
          %v330 = vrcp.pop 128.0
          %v331 = vmul.f32 %v267, %v330
          %v332 = vmul.f32 %v269, %v330
          %v333 = vmul.f32 %v271, %v330
          %v334 = vmul.f32 %v273, %v330
          %v335 = vmul.f32 %v275, %v330
          %v336 = vmul.f32 %v277, %v330
          %v337 = vmul.f32 %v279, %v330
          %v338 = vmul.f32 %v281, %v330
          %v339 = vmul.f32 %v283, %v330
          %v340 = vmul.f32 %v285, %v330
          %v341 = vmul.f32 %v287, %v330
          %v342 = vmul.f32 %v289, %v330
          %v343 = vmul.f32 %v291, %v330
          %v344 = vmul.f32 %v293, %v330
          %v345 = vmul.f32 %v295, %v330
          %v346 = vmul.f32 %v297, %v330
          %v347 = vmul.f32 %v299, %v330
          %v348 = vmul.f32 %v301, %v330
          %v349 = vmul.f32 %v303, %v330
          %v350 = vmul.f32 %v305, %v330
          %v351 = vmul.f32 %v307, %v330
          %v352 = vmul.f32 %v309, %v330
          %v353 = vmul.f32 %v311, %v330
          %v354 = vmul.f32 %v313, %v330
          %v355 = vmul.f32 %v315, %v330
          %v356 = vmul.f32 %v317, %v330
          %v357 = vmul.f32 %v319, %v330
          %v358 = vmul.f32 %v321, %v330
          %v359 = vmul.f32 %v323, %v330
          %v360 = vmul.f32 %v325, %v330
          %v361 = vmul.f32 %v327, %v330
          %v362 = vmul.f32 %v329, %v330
          %v363 = vsub.f32 %v234, %v331
          %v364 = vsub.f32 %v235, %v332
          %v365 = vsub.f32 %v236, %v333
          %v366 = vsub.f32 %v237, %v334
          %v367 = vsub.f32 %v238, %v335
          %v368 = vsub.f32 %v239, %v336
          %v369 = vsub.f32 %v240, %v337
          %v370 = vsub.f32 %v241, %v338
          %v371 = vsub.f32 %v242, %v339
          %v372 = vsub.f32 %v243, %v340
          %v373 = vsub.f32 %v244, %v341
          %v374 = vsub.f32 %v245, %v342
          %v375 = vsub.f32 %v246, %v343
          %v376 = vsub.f32 %v247, %v344
          %v377 = vsub.f32 %v248, %v345
          %v378 = vsub.f32 %v249, %v346
          %v379 = vsub.f32 %v250, %v347
          %v380 = vsub.f32 %v251, %v348
          %v381 = vsub.f32 %v252, %v349
          %v382 = vsub.f32 %v253, %v350
          %v383 = vsub.f32 %v254, %v351
          %v384 = vsub.f32 %v255, %v352
          %v385 = vsub.f32 %v256, %v353
          %v386 = vsub.f32 %v257, %v354
          %v387 = vsub.f32 %v258, %v355
          %v388 = vsub.f32 %v259, %v356
          %v389 = vsub.f32 %v260, %v357
          %v390 = vsub.f32 %v261, %v358
          %v391 = vsub.f32 %v262, %v359
          %v392 = vsub.f32 %v263, %v360
          %v393 = vsub.f32 %v264, %v361
          %v394 = vsub.f32 %v265, %v362
          %v395 = vmul.f32 %v363, %v363
          %v396 = vmul.f32 %v364, %v364
          %v397 = vmul.f32 %v365, %v365
          %v398 = vmul.f32 %v366, %v366
          %v399 = vmul.f32 %v367, %v367
          %v400 = vmul.f32 %v368, %v368
          %v401 = vmul.f32 %v369, %v369
          %v402 = vmul.f32 %v370, %v370
          %v403 = vmul.f32 %v371, %v371
          %v404 = vmul.f32 %v372, %v372
          %v405 = vmul.f32 %v373, %v373
          %v406 = vmul.f32 %v374, %v374
          %v407 = vmul.f32 %v375, %v375
          %v408 = vmul.f32 %v376, %v376
          %v409 = vmul.f32 %v377, %v377
          %v410 = vmul.f32 %v378, %v378
          %v411 = vmul.f32 %v379, %v379
          %v412 = vmul.f32 %v380, %v380
          %v413 = vmul.f32 %v381, %v381
          %v414 = vmul.f32 %v382, %v382
          %v415 = vmul.f32 %v383, %v383
          %v416 = vmul.f32 %v384, %v384
          %v417 = vmul.f32 %v385, %v385
          %v418 = vmul.f32 %v386, %v386
          %v419 = vmul.f32 %v387, %v387
          %v420 = vmul.f32 %v388, %v388
          %v421 = vmul.f32 %v389, %v389
          %v422 = vmul.f32 %v390, %v390
          %v423 = vmul.f32 %v391, %v391
          %v424 = vmul.f32 %v392, %v392
          %v425 = vmul.f32 %v393, %v393
          %v426 = vmul.f32 %v394, %v394
          %427 = vadd.xlane.f32.xlu0 %v395
          %v428 = vpop.xlane.xlu0 %427
          %429 = vadd.xlane.f32.xlu0 %v396
          %v430 = vpop.xlane.xlu0 %429
          %431 = vadd.xlane.f32.xlu0 %v397
          %v432 = vpop.xlane.xlu0 %431
          %433 = vadd.xlane.f32.xlu0 %v398
          %v434 = vpop.xlane.xlu0 %433
          %435 = vadd.xlane.f32.xlu0 %v399
          %v436 = vpop.xlane.xlu0 %435
          %437 = vadd.xlane.f32.xlu0 %v400
          %v438 = vpop.xlane.xlu0 %437
          %439 = vadd.xlane.f32.xlu0 %v401
          %v440 = vpop.xlane.xlu0 %439
          %441 = vadd.xlane.f32.xlu0 %v402
          %v442 = vpop.xlane.xlu0 %441
          %443 = vadd.xlane.f32.xlu0 %v403
          %v444 = vpop.xlane.xlu0 %443
          %445 = vadd.xlane.f32.xlu0 %v404
          %v446 = vpop.xlane.xlu0 %445
          %447 = vadd.xlane.f32.xlu0 %v405
          %v448 = vpop.xlane.xlu0 %447
          %449 = vadd.xlane.f32.xlu0 %v406
          %v450 = vpop.xlane.xlu0 %449
          %451 = vadd.xlane.f32.xlu0 %v407
          %v452 = vpop.xlane.xlu0 %451
          %453 = vadd.xlane.f32.xlu0 %v408
          %v454 = vpop.xlane.xlu0 %453
          %455 = vadd.xlane.f32.xlu0 %v409
          %v456 = vpop.xlane.xlu0 %455
          %457 = vadd.xlane.f32.xlu0 %v410
          %v458 = vpop.xlane.xlu0 %457
          %459 = vadd.xlane.f32.xlu0 %v411
          %v460 = vpop.xlane.xlu0 %459
          %461 = vadd.xlane.f32.xlu0 %v412
          %v462 = vpop.xlane.xlu0 %461
          %463 = vadd.xlane.f32.xlu0 %v413
          %v464 = vpop.xlane.xlu0 %463
          %465 = vadd.xlane.f32.xlu0 %v414
          %v466 = vpop.xlane.xlu0 %465
          %467 = vadd.xlane.f32.xlu0 %v415
          %v468 = vpop.xlane.xlu0 %467
          %469 = vadd.xlane.f32.xlu0 %v416
          %v470 = vpop.xlane.xlu0 %469
          %471 = vadd.xlane.f32.xlu0 %v417
          %v472 = vpop.xlane.xlu0 %471
          %473 = vadd.xlane.f32.xlu0 %v418
          %v474 = vpop.xlane.xlu0 %473
          %475 = vadd.xlane.f32.xlu0 %v419
          %v476 = vpop.xlane.xlu0 %475
          %477 = vadd.xlane.f32.xlu0 %v420
          %v478 = vpop.xlane.xlu0 %477
          %479 = vadd.xlane.f32.xlu0 %v421
          %v480 = vpop.xlane.xlu0 %479
          %481 = vadd.xlane.f32.xlu0 %v422
          %v482 = vpop.xlane.xlu0 %481
          %483 = vadd.xlane.f32.xlu0 %v423
          %v484 = vpop.xlane.xlu0 %483
          %485 = vadd.xlane.f32.xlu0 %v424
          %v486 = vpop.xlane.xlu0 %485
          %487 = vadd.xlane.f32.xlu0 %v425
          %v488 = vpop.xlane.xlu0 %487
          %489 = vadd.xlane.f32.xlu0 %v426
          %v490 = vpop.xlane.xlu0 %489
          %v491 = vmul.f32 %v428, %v330
          %v492 = vmul.f32 %v430, %v330
          %v493 = vmul.f32 %v432, %v330
          %v494 = vmul.f32 %v434, %v330
          %v495 = vmul.f32 %v436, %v330
          %v496 = vmul.f32 %v438, %v330
          %v497 = vmul.f32 %v440, %v330
          %v498 = vmul.f32 %v442, %v330
          %v499 = vmul.f32 %v444, %v330
          %v500 = vmul.f32 %v446, %v330
          %v501 = vmul.f32 %v448, %v330
          %v502 = vmul.f32 %v450, %v330
          %v503 = vmul.f32 %v452, %v330
          %v504 = vmul.f32 %v454, %v330
          %v505 = vmul.f32 %v456, %v330
          %v506 = vmul.f32 %v458, %v330
          %v507 = vmul.f32 %v460, %v330
          %v508 = vmul.f32 %v462, %v330
          %v509 = vmul.f32 %v464, %v330
          %v510 = vmul.f32 %v466, %v330
          %v511 = vmul.f32 %v468, %v330
          %v512 = vmul.f32 %v470, %v330
          %v513 = vmul.f32 %v472, %v330
          %v514 = vmul.f32 %v474, %v330
          %v515 = vmul.f32 %v476, %v330
          %v516 = vmul.f32 %v478, %v330
          %v517 = vmul.f32 %v480, %v330
          %v518 = vmul.f32 %v482, %v330
          %v519 = vmul.f32 %v484, %v330
          %v520 = vmul.f32 %v486, %v330
          %v521 = vmul.f32 %v488, %v330
          %v522 = vmul.f32 %v490, %v330
          %v523 = vadd.f32 %v491, 1e-05
          %v524 = vadd.f32 %v492, 1e-05
          %v525 = vadd.f32 %v493, 1e-05
          %v526 = vadd.f32 %v494, 1e-05
          %v527 = vadd.f32 %v495, 1e-05
          %v528 = vadd.f32 %v496, 1e-05
          %v529 = vadd.f32 %v497, 1e-05
          %v530 = vadd.f32 %v498, 1e-05
          %v531 = vadd.f32 %v499, 1e-05
          %v532 = vadd.f32 %v500, 1e-05
          %v533 = vadd.f32 %v501, 1e-05
          %v534 = vadd.f32 %v502, 1e-05
          %v535 = vadd.f32 %v503, 1e-05
          %v536 = vadd.f32 %v504, 1e-05
          %v537 = vadd.f32 %v505, 1e-05
          %v538 = vadd.f32 %v506, 1e-05
          %v539 = vadd.f32 %v507, 1e-05
          %v540 = vadd.f32 %v508, 1e-05
          %v541 = vadd.f32 %v509, 1e-05
          %v542 = vadd.f32 %v510, 1e-05
          %v543 = vadd.f32 %v511, 1e-05
          %v544 = vadd.f32 %v512, 1e-05
          %v545 = vadd.f32 %v513, 1e-05
          %v546 = vadd.f32 %v514, 1e-05
          %v547 = vadd.f32 %v515, 1e-05
          %v548 = vadd.f32 %v516, 1e-05
          %v549 = vadd.f32 %v517, 1e-05
          %v550 = vadd.f32 %v518, 1e-05
          %v551 = vadd.f32 %v519, 1e-05
          %v552 = vadd.f32 %v520, 1e-05
          %v553 = vadd.f32 %v521, 1e-05
          %v554 = vadd.f32 %v522, 1e-05
          %v555 = vrsqrt.pop %v523
          %v556 = vrsqrt.pop %v524
          %v557 = vrsqrt.pop %v525
          %v558 = vrsqrt.pop %v526
          %v559 = vrsqrt.pop %v527
          %v560 = vrsqrt.pop %v528
          %v561 = vrsqrt.pop %v529
          %v562 = vrsqrt.pop %v530
          %v563 = vrsqrt.pop %v531
          %v564 = vrsqrt.pop %v532
          %v565 = vrsqrt.pop %v533
          %v566 = vrsqrt.pop %v534
          %v567 = vrsqrt.pop %v535
          %v568 = vrsqrt.pop %v536
          %v569 = vrsqrt.pop %v537
          %v570 = vrsqrt.pop %v538
          %v571 = vrsqrt.pop %v539
          %v572 = vrsqrt.pop %v540
          %v573 = vrsqrt.pop %v541
          %v574 = vrsqrt.pop %v542
          %v575 = vrsqrt.pop %v543
          %v576 = vrsqrt.pop %v544
          %v577 = vrsqrt.pop %v545
          %v578 = vrsqrt.pop %v546
          %v579 = vrsqrt.pop %v547
          %v580 = vrsqrt.pop %v548
          %v581 = vrsqrt.pop %v549
          %v582 = vrsqrt.pop %v550
          %v583 = vrsqrt.pop %v551
          %v584 = vrsqrt.pop %v552
          %v585 = vrsqrt.pop %v553
          %v586 = vrsqrt.pop %v554
          %v587 = vmul.f32 %v363, %v555
          %v588 = vmul.f32 %v364, %v556
          %v589 = vmul.f32 %v365, %v557
          %v590 = vmul.f32 %v366, %v558
          %v591 = vmul.f32 %v367, %v559
          %v592 = vmul.f32 %v368, %v560
          %v593 = vmul.f32 %v369, %v561
          %v594 = vmul.f32 %v370, %v562
          %v595 = vmul.f32 %v371, %v563
          %v596 = vmul.f32 %v372, %v564
          %v597 = vmul.f32 %v373, %v565
          %v598 = vmul.f32 %v374, %v566
          %v599 = vmul.f32 %v375, %v567
          %v600 = vmul.f32 %v376, %v568
          %v601 = vmul.f32 %v377, %v569
          %v602 = vmul.f32 %v378, %v570
          %v603 = vmul.f32 %v379, %v571
          %v604 = vmul.f32 %v380, %v572
          %v605 = vmul.f32 %v381, %v573
          %v606 = vmul.f32 %v382, %v574
          %v607 = vmul.f32 %v383, %v575
          %v608 = vmul.f32 %v384, %v576
          %v609 = vmul.f32 %v385, %v577
          %v610 = vmul.f32 %v386, %v578
          %v611 = vmul.f32 %v387, %v579
          %v612 = vmul.f32 %v388, %v580
          %v613 = vmul.f32 %v389, %v581
          %v614 = vmul.f32 %v390, %v582
          %v615 = vmul.f32 %v391, %v583
          %v616 = vmul.f32 %v392, %v584
          %v617 = vmul.f32 %v393, %v585
          %v618 = vmul.f32 %v394, %v586
          %v619 = vld [vmem:[#allocation10] sm:$0x1]
          %v620 = vlaneseq
          %v621 = vshrl.u32 %v620, 7
          %v622 = vsub.s32 0, %v621
          %v623 = vrot.slane %v619, %v622
          %v624 = vmul.f32 %v587, %v623
          %v625 = vmul.f32 %v588, %v623
          %v626 = vmul.f32 %v589, %v623
          %v627 = vmul.f32 %v590, %v623
          %v628 = vmul.f32 %v591, %v623
          %v629 = vmul.f32 %v592, %v623
          %v630 = vmul.f32 %v593, %v623
          %v631 = vmul.f32 %v594, %v623
          %v632 = vmul.f32 %v595, %v623
          %v633 = vmul.f32 %v596, %v623
          %v634 = vmul.f32 %v597, %v623
          %v635 = vmul.f32 %v598, %v623
          %v636 = vmul.f32 %v599, %v623
          %v637 = vmul.f32 %v600, %v623
          %v638 = vmul.f32 %v601, %v623
          %v639 = vmul.f32 %v602, %v623
          %v640 = vmul.f32 %v603, %v623
          %v641 = vmul.f32 %v604, %v623
          %v642 = vmul.f32 %v605, %v623
          %v643 = vmul.f32 %v606, %v623
          %v644 = vmul.f32 %v607, %v623
          %v645 = vmul.f32 %v608, %v623
          %v646 = vmul.f32 %v609, %v623
          %v647 = vmul.f32 %v610, %v623
          %v648 = vmul.f32 %v611, %v623
          %v649 = vmul.f32 %v612, %v623
          %v650 = vmul.f32 %v613, %v623
          %v651 = vmul.f32 %v614, %v623
          %v652 = vmul.f32 %v615, %v623
          %v653 = vmul.f32 %v616, %v623
          %v654 = vmul.f32 %v617, %v623
          %v655 = vmul.f32 %v618, %v623
          %v656 = vld [vmem:[#allocation10 + $0x1] sm:$0x1]
          %v657 = vlaneseq
          %v658 = vshrl.u32 %v657, 7
          %v659 = vsub.s32 0, %v658
          %v660 = vrot.slane %v656, %v659
          %v661 = vadd.f32 %v624, %v660
          %v662 = vadd.f32 %v625, %v660
          %v663 = vadd.f32 %v626, %v660
          %v664 = vadd.f32 %v627, %v660
          %v665 = vadd.f32 %v628, %v660
          %v666 = vadd.f32 %v629, %v660
          %v667 = vadd.f32 %v630, %v660
          %v668 = vadd.f32 %v631, %v660
          %v669 = vadd.f32 %v632, %v660
          %v670 = vadd.f32 %v633, %v660
          %v671 = vadd.f32 %v634, %v660
          %v672 = vadd.f32 %v635, %v660
          %v673 = vadd.f32 %v636, %v660
          %v674 = vadd.f32 %v637, %v660
          %v675 = vadd.f32 %v638, %v660
          %v676 = vadd.f32 %v639, %v660
          %v677 = vadd.f32 %v640, %v660
          %v678 = vadd.f32 %v641, %v660
          %v679 = vadd.f32 %v642, %v660
          %v680 = vadd.f32 %v643, %v660
          %v681 = vadd.f32 %v644, %v660
          %v682 = vadd.f32 %v645, %v660
          %v683 = vadd.f32 %v646, %v660
          %v684 = vadd.f32 %v647, %v660
          %v685 = vadd.f32 %v648, %v660
          %v686 = vadd.f32 %v649, %v660
          %v687 = vadd.f32 %v650, %v660
          %v688 = vadd.f32 %v651, %v660
          %v689 = vadd.f32 %v652, %v660
          %v690 = vadd.f32 %v653, %v660
          %v691 = vadd.f32 %v654, %v660
          %v692 = vadd.f32 %v655, %v660
          %v693 = vpack.c.bf16 %v662, %v661
          %v694 = vpack.c.bf16 %v664, %v663
          %v695 = vpack.c.bf16 %v666, %v665
          %v696 = vpack.c.bf16 %v668, %v667
          %v697 = vpack.c.bf16 %v670, %v669
          %v698 = vpack.c.bf16 %v672, %v671
          %v699 = vpack.c.bf16 %v674, %v673
          %v700 = vpack.c.bf16 %v676, %v675
          %v701 = vpack.c.bf16 %v678, %v677
          %v702 = vpack.c.bf16 %v680, %v679
          %v703 = vpack.c.bf16 %v682, %v681
          %v704 = vpack.c.bf16 %v684, %v683
          %v705 = vpack.c.bf16 %v686, %v685
          %v706 = vpack.c.bf16 %v688, %v687
          %v707 = vpack.c.bf16 %v690, %v689
          %v708 = vpack.c.bf16 %v692, %v691
          %v725 = vunpack.c.l.b16 %v693
          %v726 = vunpack.c.h.b16 %v693
          %v727 = vunpack.c.l.b16 %v694
          %v728 = vunpack.c.h.b16 %v694
          %v729 = vunpack.c.l.b16 %v695
          %v730 = vunpack.c.h.b16 %v695
          %v731 = vunpack.c.l.b16 %v696
          %v732 = vunpack.c.h.b16 %v696
          %v733 = vunpack.c.l.b16 %v697
          %v734 = vunpack.c.h.b16 %v697
          %v735 = vunpack.c.l.b16 %v698
          %v736 = vunpack.c.h.b16 %v698
          %v737 = vunpack.c.l.b16 %v699
          %v738 = vunpack.c.h.b16 %v699
          %v739 = vunpack.c.l.b16 %v700
          %v740 = vunpack.c.h.b16 %v700
          %v741 = vunpack.c.l.b16 %v701
          %v742 = vunpack.c.h.b16 %v701
          %v743 = vunpack.c.l.b16 %v702
          %v744 = vunpack.c.h.b16 %v702
          %v745 = vunpack.c.l.b16 %v703
          %v746 = vunpack.c.h.b16 %v703
          %v747 = vunpack.c.l.b16 %v704
          %v748 = vunpack.c.h.b16 %v704
          %v749 = vunpack.c.l.b16 %v705
          %v750 = vunpack.c.h.b16 %v705
          %v751 = vunpack.c.l.b16 %v706
          %v752 = vunpack.c.h.b16 %v706
          %v753 = vunpack.c.l.b16 %v707
          %v754 = vunpack.c.h.b16 %v707
          %v755 = vunpack.c.l.b16 %v708
          %v756 = vunpack.c.h.b16 %v708
          %v757 = vpack.c.b16 %v725, %v725
          %v758 = vpack.c.b16 %v726, %v726
          %v759 = vpack.c.b16 %v727, %v727
          %v760 = vpack.c.b16 %v728, %v728
          %v761 = vpack.c.b16 %v729, %v729
          %v762 = vpack.c.b16 %v730, %v730
          %v763 = vpack.c.b16 %v731, %v731
          %v764 = vpack.c.b16 %v732, %v732
          %v765 = vpack.c.b16 %v733, %v733
          %v766 = vpack.c.b16 %v734, %v734
          %v767 = vpack.c.b16 %v735, %v735
          %v768 = vpack.c.b16 %v736, %v736
          %v769 = vpack.c.b16 %v737, %v737
          %v770 = vpack.c.b16 %v738, %v738
          %v771 = vpack.c.b16 %v739, %v739
          %v772 = vpack.c.b16 %v740, %v740
          %v773 = vpack.c.b16 %v741, %v741
          %v774 = vpack.c.b16 %v742, %v742
          %v775 = vpack.c.b16 %v743, %v743
          %v776 = vpack.c.b16 %v744, %v744
          %v777 = vpack.c.b16 %v745, %v745
          %v778 = vpack.c.b16 %v746, %v746
          %v779 = vpack.c.b16 %v747, %v747
          %v780 = vpack.c.b16 %v748, %v748
          %v781 = vpack.c.b16 %v749, %v749
          %v782 = vpack.c.b16 %v750, %v750
          %v783 = vpack.c.b16 %v751, %v751
          %v784 = vpack.c.b16 %v752, %v752
          %v785 = vpack.c.b16 %v753, %v753
          %v786 = vpack.c.b16 %v754, %v754
          %v787 = vpack.c.b16 %v755, %v755
          %v788 = vpack.c.b16 %v756, %v756
          %821 = vst [vmem:[#allocation3] sm:$0xf] %v757
          %822 = vst [vmem:[#allocation3 + $0x4] sm:$0xf] %v758
          %823 = vst [vmem:[#allocation3 + $0x8] sm:$0xf] %v759
          %824 = vst [vmem:[#allocation3 + $0xc] sm:$0xf] %v760
          %825 = vst [vmem:[#allocation3 + $0x10] sm:$0xf] %v761
          %826 = vst [vmem:[#allocation3 + $0x14] sm:$0xf] %v762
          %827 = vst [vmem:[#allocation3 + $0x18] sm:$0xf] %v763
          %828 = vst [vmem:[#allocation3 + $0x1c] sm:$0xf] %v764
          %829 = vst [vmem:[#allocation3 + $0x20] sm:$0xf] %v765
          %830 = vst [vmem:[#allocation3 + $0x24] sm:$0xf] %v766
          %831 = vst [vmem:[#allocation3 + $0x28] sm:$0xf] %v767
          %832 = vst [vmem:[#allocation3 + $0x2c] sm:$0xf] %v768
          %833 = vst [vmem:[#allocation3 + $0x30] sm:$0xf] %v769
          %834 = vst [vmem:[#allocation3 + $0x34] sm:$0xf] %v770
          %835 = vst [vmem:[#allocation3 + $0x38] sm:$0xf] %v771
          %836 = vst [vmem:[#allocation3 + $0x3c] sm:$0xf] %v772
          %837 = vst [vmem:[#allocation3 + $0x40] sm:$0xf] %v773
          %838 = vst [vmem:[#allocation3 + $0x44] sm:$0xf] %v774
          %839 = vst [vmem:[#allocation3 + $0x48] sm:$0xf] %v775
          %840 = vst [vmem:[#allocation3 + $0x4c] sm:$0xf] %v776
          %841 = vst [vmem:[#allocation3 + $0x50] sm:$0xf] %v777
          %842 = vst [vmem:[#allocation3 + $0x54] sm:$0xf] %v778
          %843 = vst [vmem:[#allocation3 + $0x58] sm:$0xf] %v779
          %844 = vst [vmem:[#allocation3 + $0x5c] sm:$0xf] %v780
          %845 = vst [vmem:[#allocation3 + $0x60] sm:$0xf] %v781
          %846 = vst [vmem:[#allocation3 + $0x64] sm:$0xf] %v782
          %847 = vst [vmem:[#allocation3 + $0x68] sm:$0xf] %v783
          %848 = vst [vmem:[#allocation3 + $0x6c] sm:$0xf] %v784
          %849 = vst [vmem:[#allocation3 + $0x70] sm:$0xf] %v785
          %850 = vst [vmem:[#allocation3 + $0x74] sm:$0xf] %v786
          %851 = vst [vmem:[#allocation3 + $0x78] sm:$0xf] %v787
          %852 = vst [vmem:[#allocation3 + $0x7c] sm:$0xf] %v788
        $region40: #{tpu_custom_call.1} parent=27 // pred_fallthru
          _
        %v853 = vld [vmem:[#allocation3] sm:$0xf]
        %v854 = vld [vmem:[#allocation3 + $0x4] sm:$0xf]
        %v855 = vld [vmem:[#allocation3 + $0x8] sm:$0xf]
        %v856 = vld [vmem:[#allocation3 + $0xc] sm:$0xf]
        %v857 = vld [vmem:[#allocation3 + $0x10] sm:$0xf]
        %v858 = vld [vmem:[#allocation3 + $0x14] sm:$0xf]
        %v859 = vld [vmem:[#allocation3 + $0x18] sm:$0xf]
        %v860 = vld [vmem:[#allocation3 + $0x1c] sm:$0xf]
        %v861 = vld [vmem:[#allocation3 + $0x20] sm:$0xf]
        %v862 = vld [vmem:[#allocation3 + $0x24] sm:$0xf]
        %v863 = vld [vmem:[#allocation3 + $0x28] sm:$0xf]
        %v864 = vld [vmem:[#allocation3 + $0x2c] sm:$0xf]
        %v865 = vld [vmem:[#allocation3 + $0x30] sm:$0xf]
        %v866 = vld [vmem:[#allocation3 + $0x34] sm:$0xf]
        %v867 = vld [vmem:[#allocation3 + $0x38] sm:$0xf]
        %v868 = vld [vmem:[#allocation3 + $0x3c] sm:$0xf]
        %v869 = vld [vmem:[#allocation3 + $0x40] sm:$0xf]
        %v870 = vld [vmem:[#allocation3 + $0x44] sm:$0xf]
        %v871 = vld [vmem:[#allocation3 + $0x48] sm:$0xf]
        %v872 = vld [vmem:[#allocation3 + $0x4c] sm:$0xf]
        %v873 = vld [vmem:[#allocation3 + $0x50] sm:$0xf]
        %v874 = vld [vmem:[#allocation3 + $0x54] sm:$0xf]
        %v875 = vld [vmem:[#allocation3 + $0x58] sm:$0xf]
        %v876 = vld [vmem:[#allocation3 + $0x5c] sm:$0xf]
        %v877 = vld [vmem:[#allocation3 + $0x60] sm:$0xf]
        %v878 = vld [vmem:[#allocation3 + $0x64] sm:$0xf]
        %v879 = vld [vmem:[#allocation3 + $0x68] sm:$0xf]
        %v880 = vld [vmem:[#allocation3 + $0x6c] sm:$0xf]
        %v881 = vld [vmem:[#allocation3 + $0x70] sm:$0xf]
        %v882 = vld [vmem:[#allocation3 + $0x74] sm:$0xf]
        %v883 = vld [vmem:[#allocation3 + $0x78] sm:$0xf]
        %v884 = vld [vmem:[#allocation3 + $0x7c] sm:$0xf]
        %v885 = vld [vmem:[%s170] sm:$0xff]
        %v886 = vld [vmem:[%s170 + $0x8] sm:$0xff]
        %v887 = vld [vmem:[%s170 + $0x10] sm:$0xff]
        %v888 = vld [vmem:[%s170 + $0x18] sm:$0xff]
        %v889 = vld [vmem:[%s170 + $0x20] sm:$0xff]
        %v890 = vld [vmem:[%s170 + $0x28] sm:$0xff]
        %v891 = vld [vmem:[%s170 + $0x30] sm:$0xff]
        %v892 = vld [vmem:[%s170 + $0x38] sm:$0xff]
        %v893 = vld [vmem:[%s170 + $0x40] sm:$0xff]
        %v894 = vld [vmem:[%s170 + $0x48] sm:$0xff]
        %v895 = vld [vmem:[%s170 + $0x50] sm:$0xff]
        %v896 = vld [vmem:[%s170 + $0x58] sm:$0xff]
        %v897 = vld [vmem:[%s170 + $0x60] sm:$0xff]
        %v898 = vld [vmem:[%s170 + $0x68] sm:$0xff]
        %v899 = vld [vmem:[%s170 + $0x70] sm:$0xff]
        %v900 = vld [vmem:[%s170 + $0x78] sm:$0xff]
        %v933 = vunpack.c.l.b16 %v853
        %v934 = vunpack.c.l.b16 %v854
        %v935 = vunpack.c.l.b16 %v855
        %v936 = vunpack.c.l.b16 %v856
        %v937 = vunpack.c.l.b16 %v857
        %v938 = vunpack.c.l.b16 %v858
        %v939 = vunpack.c.l.b16 %v859
        %v940 = vunpack.c.l.b16 %v860
        %v941 = vunpack.c.l.b16 %v861
        %v942 = vunpack.c.l.b16 %v862
        %v943 = vunpack.c.l.b16 %v863
        %v944 = vunpack.c.l.b16 %v864
        %v945 = vunpack.c.l.b16 %v865
        %v946 = vunpack.c.l.b16 %v866
        %v947 = vunpack.c.l.b16 %v867
        %v948 = vunpack.c.l.b16 %v868
        %v949 = vunpack.c.l.b16 %v869
        %v950 = vunpack.c.l.b16 %v870
        %v951 = vunpack.c.l.b16 %v871
        %v952 = vunpack.c.l.b16 %v872
        %v953 = vunpack.c.l.b16 %v873
        %v954 = vunpack.c.l.b16 %v874
        %v955 = vunpack.c.l.b16 %v875
        %v956 = vunpack.c.l.b16 %v876
        %v957 = vunpack.c.l.b16 %v877
        %v958 = vunpack.c.l.b16 %v878
        %v959 = vunpack.c.l.b16 %v879
        %v960 = vunpack.c.l.b16 %v880
        %v961 = vunpack.c.l.b16 %v881
        %v962 = vunpack.c.l.b16 %v882
        %v963 = vunpack.c.l.b16 %v883
        %v964 = vunpack.c.l.b16 %v884
        %v965 = vpack.c.b16 %v934, %v933
        %v966 = vpack.c.b16 %v936, %v935
        %v967 = vpack.c.b16 %v938, %v937
        %v968 = vpack.c.b16 %v940, %v939
        %v969 = vpack.c.b16 %v942, %v941
        %v970 = vpack.c.b16 %v944, %v943
        %v971 = vpack.c.b16 %v946, %v945
        %v972 = vpack.c.b16 %v948, %v947
        %v973 = vpack.c.b16 %v950, %v949
        %v974 = vpack.c.b16 %v952, %v951
        %v975 = vpack.c.b16 %v954, %v953
        %v976 = vpack.c.b16 %v956, %v955
        %v977 = vpack.c.b16 %v958, %v957
        %v978 = vpack.c.b16 %v960, %v959
        %v979 = vpack.c.b16 %v962, %v961
        %v980 = vpack.c.b16 %v964, %v963
        %v1013 = vunpack.c.l.b16 %v885
        %v1014 = vunpack.c.h.b16 %v885
        %v1015 = vunpack.c.l.b16 %v886
        %v1016 = vunpack.c.h.b16 %v886
        %v1017 = vunpack.c.l.b16 %v887
        %v1018 = vunpack.c.h.b16 %v887
        %v1019 = vunpack.c.l.b16 %v888
        %v1020 = vunpack.c.h.b16 %v888
        %v1021 = vunpack.c.l.b16 %v889
        %v1022 = vunpack.c.h.b16 %v889
        %v1023 = vunpack.c.l.b16 %v890
        %v1024 = vunpack.c.h.b16 %v890
        %v1025 = vunpack.c.l.b16 %v891
        %v1026 = vunpack.c.h.b16 %v891
        %v1027 = vunpack.c.l.b16 %v892
        %v1028 = vunpack.c.h.b16 %v892
        %v1029 = vunpack.c.l.b16 %v893
        %v1030 = vunpack.c.h.b16 %v893
        %v1031 = vunpack.c.l.b16 %v894
        %v1032 = vunpack.c.h.b16 %v894
        %v1033 = vunpack.c.l.b16 %v895
        %v1034 = vunpack.c.h.b16 %v895
        %v1035 = vunpack.c.l.b16 %v896
        %v1036 = vunpack.c.h.b16 %v896
        %v1037 = vunpack.c.l.b16 %v897
        %v1038 = vunpack.c.h.b16 %v897
        %v1039 = vunpack.c.l.b16 %v898
        %v1040 = vunpack.c.h.b16 %v898
        %v1041 = vunpack.c.l.b16 %v899
        %v1042 = vunpack.c.h.b16 %v899
        %v1043 = vunpack.c.l.b16 %v900
        %v1044 = vunpack.c.h.b16 %v900
        %v1045 = vpack.c.b16 %v1015, %v1013
        %v1046 = vpack.c.b16 %v1016, %v1014
        %v1047 = vpack.c.b16 %v1019, %v1017
        %v1048 = vpack.c.b16 %v1020, %v1018
        %v1049 = vpack.c.b16 %v1023, %v1021
        %v1050 = vpack.c.b16 %v1024, %v1022
        %v1051 = vpack.c.b16 %v1027, %v1025
        %v1052 = vpack.c.b16 %v1028, %v1026
        %v1053 = vpack.c.b16 %v1031, %v1029
        %v1054 = vpack.c.b16 %v1032, %v1030
        %v1055 = vpack.c.b16 %v1035, %v1033
        %v1056 = vpack.c.b16 %v1036, %v1034
        %v1057 = vpack.c.b16 %v1039, %v1037
        %v1058 = vpack.c.b16 %v1040, %v1038
        %v1059 = vpack.c.b16 %v1043, %v1041
        %v1060 = vpack.c.b16 %v1044, %v1042
        %1077 = vmatprep.subr.bf16.mxu0 %v1060
        %1078 = vmatpush1.bf16.msra.mxu0 %v1059
        %1079 = vmatprep.subr.bf16.mxu0 %v1058
        %1080 = vmatpush1.bf16.msra.mxu0 %v1057
        %1081 = vmatprep.subr.bf16.mxu0 %v1056
        %1082 = vmatpush1.bf16.msra.mxu0 %v1055
        %1083 = vmatprep.subr.bf16.mxu0 %v1054
        %1084 = vmatpush1.bf16.msra.mxu0 %v1053
        %1085 = vmatprep.subr.bf16.mxu0 %v1052
        %1086 = vmatpush1.bf16.msra.mxu0 %v1051
        %1087 = vmatprep.subr.bf16.mxu0 %v1050
        %1088 = vmatpush1.bf16.msra.mxu0 %v1049
        %1089 = vmatprep.subr.bf16.mxu0 %v1048
        %1090 = vmatpush1.bf16.msra.mxu0 %v1047
        %1091 = vmatprep.subr.bf16.mxu0 %v1046
        %1092 = vmatpush1.bf16.msra.mxu0 %v1045
        %1093 = vmatprep.subr.bf16.mxu0 0
        %1094 = vmatpush2.bf16.msra.mxu0 0
        %1095 = vmatprep.subr.bf16.mxu0 0
        %1096 = vmatpush2.bf16.msra.mxu0 0
        %1097 = vmatprep.subr.bf16.mxu0 0
        %1098 = vmatpush2.bf16.msra.mxu0 0
        %1099 = vmatprep.subr.bf16.mxu0 0
        %1100 = vmatpush2.bf16.msra.mxu0 0
        %1101 = vmatprep.subr.bf16.mxu0 0
        %1102 = vmatpush2.bf16.msra.mxu0 0
        %1103 = vmatprep.subr.bf16.mxu0 0
        %1104 = vmatpush2.bf16.msra.mxu0 0
        %1105 = vmatprep.subr.bf16.mxu0 0
        %1106 = vmatpush2.bf16.msra.mxu0 0
        %1107 = vmatprep.subr.bf16.mxu0 0
        %1108 = vmatpush2.bf16.msra.mxu0 0
        %1109 = vmatprep.mubr.bf16.mxu0 0
        %1110 = vmatmul.mubr.bf16.gmra.mxu0 %v965
        %v1111 = vpop.f32.mrf.mxu0
        %v1112 = vadd.f32 0.0, %v1111
        %v1113 = vpop.f32.mrf.mxu0
        %v1114 = vadd.f32 0.0, %v1113
        %v1115 = vpop.f32.mrf.mxu0
        %v1116 = vadd.f32 0.0, %v1115
        %v1117 = vpop.f32.mrf.mxu0
        %v1118 = vadd.f32 0.0, %v1117
        %1119 = vmatprep.mubr.bf16.mxu0 0
        %1120 = vmatmul.mubr.bf16.gmra.mxu0 %v966
        %v1121 = vpop.f32.mrf.mxu0
        %v1122 = vadd.f32 0.0, %v1121
        %v1123 = vpop.f32.mrf.mxu0
        %v1124 = vadd.f32 0.0, %v1123
        %v1125 = vpop.f32.mrf.mxu0
        %v1126 = vadd.f32 0.0, %v1125
        %v1127 = vpop.f32.mrf.mxu0
        %v1128 = vadd.f32 0.0, %v1127
        %1129 = vmatprep.mubr.bf16.mxu0 0
        %1130 = vmatmul.mubr.bf16.gmra.mxu0 %v967
        %v1131 = vpop.f32.mrf.mxu0
        %v1132 = vadd.f32 0.0, %v1131
        %v1133 = vpop.f32.mrf.mxu0
        %v1134 = vadd.f32 0.0, %v1133
        %v1135 = vpop.f32.mrf.mxu0
        %v1136 = vadd.f32 0.0, %v1135
        %v1137 = vpop.f32.mrf.mxu0
        %v1138 = vadd.f32 0.0, %v1137
        %1139 = vmatprep.mubr.bf16.mxu0 0
        %1140 = vmatmul.mubr.bf16.gmra.mxu0 %v968
        %v1141 = vpop.f32.mrf.mxu0
        %v1142 = vadd.f32 0.0, %v1141
        %v1143 = vpop.f32.mrf.mxu0
        %v1144 = vadd.f32 0.0, %v1143
        %v1145 = vpop.f32.mrf.mxu0
        %v1146 = vadd.f32 0.0, %v1145
        %v1147 = vpop.f32.mrf.mxu0
        %v1148 = vadd.f32 0.0, %v1147
        %1149 = vmatprep.mubr.bf16.mxu0 0
        %1150 = vmatmul.mubr.bf16.gmra.mxu0 %v969
        %v1151 = vpop.f32.mrf.mxu0
        %v1152 = vadd.f32 0.0, %v1151
        %v1153 = vpop.f32.mrf.mxu0
        %v1154 = vadd.f32 0.0, %v1153
        %v1155 = vpop.f32.mrf.mxu0
        %v1156 = vadd.f32 0.0, %v1155
        %v1157 = vpop.f32.mrf.mxu0
        %v1158 = vadd.f32 0.0, %v1157
        %1159 = vmatprep.mubr.bf16.mxu0 0
        %1160 = vmatmul.mubr.bf16.gmra.mxu0 %v970
        %v1161 = vpop.f32.mrf.mxu0
        %v1162 = vadd.f32 0.0, %v1161
        %v1163 = vpop.f32.mrf.mxu0
        %v1164 = vadd.f32 0.0, %v1163
        %v1165 = vpop.f32.mrf.mxu0
        %v1166 = vadd.f32 0.0, %v1165
        %v1167 = vpop.f32.mrf.mxu0
        %v1168 = vadd.f32 0.0, %v1167
        %1169 = vmatprep.mubr.bf16.mxu0 0
        %1170 = vmatmul.mubr.bf16.gmra.mxu0 %v971
        %v1171 = vpop.f32.mrf.mxu0
        %v1172 = vadd.f32 0.0, %v1171
        %v1173 = vpop.f32.mrf.mxu0
        %v1174 = vadd.f32 0.0, %v1173
        %v1175 = vpop.f32.mrf.mxu0
        %v1176 = vadd.f32 0.0, %v1175
        %v1177 = vpop.f32.mrf.mxu0
        %v1178 = vadd.f32 0.0, %v1177
        %1179 = vmatprep.mubr.bf16.mxu0 0
        %1180 = vmatmul.mubr.bf16.gmra.mxu0 %v972
        %v1181 = vpop.f32.mrf.mxu0
        %v1182 = vadd.f32 0.0, %v1181
        %v1183 = vpop.f32.mrf.mxu0
        %v1184 = vadd.f32 0.0, %v1183
        %v1185 = vpop.f32.mrf.mxu0
        %v1186 = vadd.f32 0.0, %v1185
        %v1187 = vpop.f32.mrf.mxu0
        %v1188 = vadd.f32 0.0, %v1187
        %1189 = vmatprep.mubr.bf16.mxu0 0
        %1190 = vmatmul.mubr.bf16.gmra.mxu0 %v973
        %v1191 = vpop.f32.mrf.mxu0
        %v1192 = vadd.f32 0.0, %v1191
        %v1193 = vpop.f32.mrf.mxu0
        %v1194 = vadd.f32 0.0, %v1193
        %v1195 = vpop.f32.mrf.mxu0
        %v1196 = vadd.f32 0.0, %v1195
        %v1197 = vpop.f32.mrf.mxu0
        %v1198 = vadd.f32 0.0, %v1197
        %1199 = vmatprep.mubr.bf16.mxu0 0
        %1200 = vmatmul.mubr.bf16.gmra.mxu0 %v974
        %v1201 = vpop.f32.mrf.mxu0
        %v1202 = vadd.f32 0.0, %v1201
        %v1203 = vpop.f32.mrf.mxu0
        %v1204 = vadd.f32 0.0, %v1203
        %v1205 = vpop.f32.mrf.mxu0
        %v1206 = vadd.f32 0.0, %v1205
        %v1207 = vpop.f32.mrf.mxu0
        %v1208 = vadd.f32 0.0, %v1207
        %1209 = vmatprep.mubr.bf16.mxu0 0
        %1210 = vmatmul.mubr.bf16.gmra.mxu0 %v975
        %v1211 = vpop.f32.mrf.mxu0
        %v1212 = vadd.f32 0.0, %v1211
        %v1213 = vpop.f32.mrf.mxu0
        %v1214 = vadd.f32 0.0, %v1213
        %v1215 = vpop.f32.mrf.mxu0
        %v1216 = vadd.f32 0.0, %v1215
        %v1217 = vpop.f32.mrf.mxu0
        %v1218 = vadd.f32 0.0, %v1217
        %1219 = vmatprep.mubr.bf16.mxu0 0
        %1220 = vmatmul.mubr.bf16.gmra.mxu0 %v976
        %v1221 = vpop.f32.mrf.mxu0
        %v1222 = vadd.f32 0.0, %v1221
        %v1223 = vpop.f32.mrf.mxu0
        %v1224 = vadd.f32 0.0, %v1223
        %v1225 = vpop.f32.mrf.mxu0
        %v1226 = vadd.f32 0.0, %v1225
        %v1227 = vpop.f32.mrf.mxu0
        %v1228 = vadd.f32 0.0, %v1227
        %1229 = vmatprep.mubr.bf16.mxu0 0
        %1230 = vmatmul.mubr.bf16.gmra.mxu0 %v977
        %v1231 = vpop.f32.mrf.mxu0
        %v1232 = vadd.f32 0.0, %v1231
        %v1233 = vpop.f32.mrf.mxu0
        %v1234 = vadd.f32 0.0, %v1233
        %v1235 = vpop.f32.mrf.mxu0
        %v1236 = vadd.f32 0.0, %v1235
        %v1237 = vpop.f32.mrf.mxu0
        %v1238 = vadd.f32 0.0, %v1237
        %1239 = vmatprep.mubr.bf16.mxu0 0
        %1240 = vmatmul.mubr.bf16.gmra.mxu0 %v978
        %v1241 = vpop.f32.mrf.mxu0
        %v1242 = vadd.f32 0.0, %v1241
        %v1243 = vpop.f32.mrf.mxu0
        %v1244 = vadd.f32 0.0, %v1243
        %v1245 = vpop.f32.mrf.mxu0
        %v1246 = vadd.f32 0.0, %v1245
        %v1247 = vpop.f32.mrf.mxu0
        %v1248 = vadd.f32 0.0, %v1247
        %1249 = vmatprep.mubr.bf16.mxu0 0
        %1250 = vmatmul.mubr.bf16.gmra.mxu0 %v979
        %v1251 = vpop.f32.mrf.mxu0
        %v1252 = vadd.f32 0.0, %v1251
        %v1253 = vpop.f32.mrf.mxu0
        %v1254 = vadd.f32 0.0, %v1253
        %v1255 = vpop.f32.mrf.mxu0
        %v1256 = vadd.f32 0.0, %v1255
        %v1257 = vpop.f32.mrf.mxu0
        %v1258 = vadd.f32 0.0, %v1257
        %1259 = vmatprep.mubr.bf16.mxu0 0
        %1260 = vmatmul.mubr.bf16.gmra.mxu0 %v980
        %v1261 = vpop.f32.mrf.mxu0
        %v1262 = vadd.f32 0.0, %v1261
        %v1263 = vpop.f32.mrf.mxu0
        %v1264 = vadd.f32 0.0, %v1263
        %v1265 = vpop.f32.mrf.mxu0
        %v1266 = vadd.f32 0.0, %v1265
        %v1267 = vpop.f32.mrf.mxu0
        %v1268 = vadd.f32 0.0, %v1267
        %1269 = vdwg.mxu0
        %v1270 = vpack.c.bf16 %v1116, %v1112
        %v1271 = vpack.c.bf16 %v1118, %v1114
        %v1272 = vpack.c.bf16 %v1126, %v1122
        %v1273 = vpack.c.bf16 %v1128, %v1124
        %v1274 = vpack.c.bf16 %v1136, %v1132
        %v1275 = vpack.c.bf16 %v1138, %v1134
        %v1276 = vpack.c.bf16 %v1146, %v1142
        %v1277 = vpack.c.bf16 %v1148, %v1144
        %v1278 = vpack.c.bf16 %v1156, %v1152
        %v1279 = vpack.c.bf16 %v1158, %v1154
        %v1280 = vpack.c.bf16 %v1166, %v1162
        %v1281 = vpack.c.bf16 %v1168, %v1164
        %v1282 = vpack.c.bf16 %v1176, %v1172
        %v1283 = vpack.c.bf16 %v1178, %v1174
        %v1284 = vpack.c.bf16 %v1186, %v1182
        %v1285 = vpack.c.bf16 %v1188, %v1184
        %v1286 = vpack.c.bf16 %v1196, %v1192
        %v1287 = vpack.c.bf16 %v1198, %v1194
        %v1288 = vpack.c.bf16 %v1206, %v1202
        %v1289 = vpack.c.bf16 %v1208, %v1204
        %v1290 = vpack.c.bf16 %v1216, %v1212
        %v1291 = vpack.c.bf16 %v1218, %v1214
        %v1292 = vpack.c.bf16 %v1226, %v1222
        %v1293 = vpack.c.bf16 %v1228, %v1224
        %v1294 = vpack.c.bf16 %v1236, %v1232
        %v1295 = vpack.c.bf16 %v1238, %v1234
        %v1296 = vpack.c.bf16 %v1246, %v1242
        %v1297 = vpack.c.bf16 %v1248, %v1244
        %v1298 = vpack.c.bf16 %v1256, %v1252
        %v1299 = vpack.c.bf16 %v1258, %v1254
        %v1300 = vpack.c.bf16 %v1266, %v1262
        %v1301 = vpack.c.bf16 %v1268, %v1264
        %v1334 = vunpack.c.l.b16 %v1270
        %v1335 = vunpack.c.l.b16 %v1271
        %v1336 = vunpack.c.h.b16 %v1270
        %v1337 = vunpack.c.h.b16 %v1271
        %v1338 = vunpack.c.l.b16 %v1272
        %v1339 = vunpack.c.l.b16 %v1273
        %v1340 = vunpack.c.h.b16 %v1272
        %v1341 = vunpack.c.h.b16 %v1273
        %v1342 = vunpack.c.l.b16 %v1274
        %v1343 = vunpack.c.l.b16 %v1275
        %v1344 = vunpack.c.h.b16 %v1274
        %v1345 = vunpack.c.h.b16 %v1275
        %v1346 = vunpack.c.l.b16 %v1276
        %v1347 = vunpack.c.l.b16 %v1277
        %v1348 = vunpack.c.h.b16 %v1276
        %v1349 = vunpack.c.h.b16 %v1277
        %v1350 = vunpack.c.l.b16 %v1278
        %v1351 = vunpack.c.l.b16 %v1279
        %v1352 = vunpack.c.h.b16 %v1278
        %v1353 = vunpack.c.h.b16 %v1279
        %v1354 = vunpack.c.l.b16 %v1280
        %v1355 = vunpack.c.l.b16 %v1281
        %v1356 = vunpack.c.h.b16 %v1280
        %v1357 = vunpack.c.h.b16 %v1281
        %v1358 = vunpack.c.l.b16 %v1282
        %v1359 = vunpack.c.l.b16 %v1283
        %v1360 = vunpack.c.h.b16 %v1282
        %v1361 = vunpack.c.h.b16 %v1283
        %v1362 = vunpack.c.l.b16 %v1284
        %v1363 = vunpack.c.l.b16 %v1285
        %v1364 = vunpack.c.h.b16 %v1284
        %v1365 = vunpack.c.h.b16 %v1285
        %v1366 = vunpack.c.l.b16 %v1286
        %v1367 = vunpack.c.l.b16 %v1287
        %v1368 = vunpack.c.h.b16 %v1286
        %v1369 = vunpack.c.h.b16 %v1287
        %v1370 = vunpack.c.l.b16 %v1288
        %v1371 = vunpack.c.l.b16 %v1289
        %v1372 = vunpack.c.h.b16 %v1288
        %v1373 = vunpack.c.h.b16 %v1289
        %v1374 = vunpack.c.l.b16 %v1290
        %v1375 = vunpack.c.l.b16 %v1291
        %v1376 = vunpack.c.h.b16 %v1290
        %v1377 = vunpack.c.h.b16 %v1291
        %v1378 = vunpack.c.l.b16 %v1292
        %v1379 = vunpack.c.l.b16 %v1293
        %v1380 = vunpack.c.h.b16 %v1292
        %v1381 = vunpack.c.h.b16 %v1293
        %v1382 = vunpack.c.l.b16 %v1294
        %v1383 = vunpack.c.l.b16 %v1295
        %v1384 = vunpack.c.h.b16 %v1294
        %v1385 = vunpack.c.h.b16 %v1295
        %v1386 = vunpack.c.l.b16 %v1296
        %v1387 = vunpack.c.l.b16 %v1297
        %v1388 = vunpack.c.h.b16 %v1296
        %v1389 = vunpack.c.h.b16 %v1297
        %v1390 = vunpack.c.l.b16 %v1298
        %v1391 = vunpack.c.l.b16 %v1299
        %v1392 = vunpack.c.h.b16 %v1298
        %v1393 = vunpack.c.h.b16 %v1299
        %v1394 = vunpack.c.l.b16 %v1300
        %v1395 = vunpack.c.l.b16 %v1301
        %v1396 = vunpack.c.h.b16 %v1300
        %v1397 = vunpack.c.h.b16 %v1301
        %v1398 = vpack.c.b16 %v1335, %v1334
        %v1399 = vpack.c.b16 %v1337, %v1336
        %v1400 = vpack.c.b16 %v1339, %v1338
        %v1401 = vpack.c.b16 %v1341, %v1340
        %v1402 = vpack.c.b16 %v1343, %v1342
        %v1403 = vpack.c.b16 %v1345, %v1344
        %v1404 = vpack.c.b16 %v1347, %v1346
        %v1405 = vpack.c.b16 %v1349, %v1348
        %v1406 = vpack.c.b16 %v1351, %v1350
        %v1407 = vpack.c.b16 %v1353, %v1352
        %v1408 = vpack.c.b16 %v1355, %v1354
        %v1409 = vpack.c.b16 %v1357, %v1356
        %v1410 = vpack.c.b16 %v1359, %v1358
        %v1411 = vpack.c.b16 %v1361, %v1360
        %v1412 = vpack.c.b16 %v1363, %v1362
        %v1413 = vpack.c.b16 %v1365, %v1364
        %v1414 = vpack.c.b16 %v1367, %v1366
        %v1415 = vpack.c.b16 %v1369, %v1368
        %v1416 = vpack.c.b16 %v1371, %v1370
        %v1417 = vpack.c.b16 %v1373, %v1372
        %v1418 = vpack.c.b16 %v1375, %v1374
        %v1419 = vpack.c.b16 %v1377, %v1376
        %v1420 = vpack.c.b16 %v1379, %v1378
        %v1421 = vpack.c.b16 %v1381, %v1380
        %v1422 = vpack.c.b16 %v1383, %v1382
        %v1423 = vpack.c.b16 %v1385, %v1384
        %v1424 = vpack.c.b16 %v1387, %v1386
        %v1425 = vpack.c.b16 %v1389, %v1388
        %v1426 = vpack.c.b16 %v1391, %v1390
        %v1427 = vpack.c.b16 %v1393, %v1392
        %v1428 = vpack.c.b16 %v1395, %v1394
        %v1429 = vpack.c.b16 %v1397, %v1396
        %1462 = vst [vmem:[%s194] sm:$0xff] %v1398
        %1463 = vst [vmem:[%s194 + $0x8] sm:$0xff] %v1399
        %1464 = vst [vmem:[%s194 + $0x10] sm:$0xff] %v1400
        %1465 = vst [vmem:[%s194 + $0x18] sm:$0xff] %v1401
        %1466 = vst [vmem:[%s194 + $0x20] sm:$0xff] %v1402
        %1467 = vst [vmem:[%s194 + $0x28] sm:$0xff] %v1403
        %1468 = vst [vmem:[%s194 + $0x30] sm:$0xff] %v1404
        %1469 = vst [vmem:[%s194 + $0x38] sm:$0xff] %v1405
        %1470 = vst [vmem:[%s194 + $0x40] sm:$0xff] %v1406
        %1471 = vst [vmem:[%s194 + $0x48] sm:$0xff] %v1407
        %1472 = vst [vmem:[%s194 + $0x50] sm:$0xff] %v1408
        %1473 = vst [vmem:[%s194 + $0x58] sm:$0xff] %v1409
        %1474 = vst [vmem:[%s194 + $0x60] sm:$0xff] %v1410
        %1475 = vst [vmem:[%s194 + $0x68] sm:$0xff] %v1411
        %1476 = vst [vmem:[%s194 + $0x70] sm:$0xff] %v1412
        %1477 = vst [vmem:[%s194 + $0x78] sm:$0xff] %v1413
        %1478 = vst [vmem:[%s194 + $0x80] sm:$0xff] %v1414
        %1479 = vst [vmem:[%s194 + $0x88] sm:$0xff] %v1415
        %1480 = vst [vmem:[%s194 + $0x90] sm:$0xff] %v1416
        %1481 = vst [vmem:[%s194 + $0x98] sm:$0xff] %v1417
        %1482 = vst [vmem:[%s194 + $0xa0] sm:$0xff] %v1418
        %1483 = vst [vmem:[%s194 + $0xa8] sm:$0xff] %v1419
        %1484 = vst [vmem:[%s194 + $0xb0] sm:$0xff] %v1420
        %1485 = vst [vmem:[%s194 + $0xb8] sm:$0xff] %v1421
        %1486 = vst [vmem:[%s194 + $0xc0] sm:$0xff] %v1422
        %1487 = vst [vmem:[%s194 + $0xc8] sm:$0xff] %v1423
        %1488 = vst [vmem:[%s194 + $0xd0] sm:$0xff] %v1424
        %1489 = vst [vmem:[%s194 + $0xd8] sm:$0xff] %v1425
        %1490 = vst [vmem:[%s194 + $0xe0] sm:$0xff] %v1426
        %1491 = vst [vmem:[%s194 + $0xe8] sm:$0xff] %v1427
        %1492 = vst [vmem:[%s194 + $0xf0] sm:$0xff] %v1428
        %1493 = vst [vmem:[%s194 + $0xf8] sm:$0xff] %v1429
        %s1494 = sand.u32 %s95, 1
        %s1495 = scalar_lea.sflag [#allocation9], %s1494
        %s1496 = sand.u32 %s95, 1
        %s1497 = smul.addr %s1496, 256
        %s1498 = scalar_lea.vmem [#allocation12], %s1497
        // Predicated region
        $region59: #{tpu_custom_call.1} parent=27 // pred_check
          %p1499 = pneg %p105
        $region60: #{tpu_custom_call.1} parent=27 // pred_check_branch
          %1501 = sbr.rel (%p1499) target = $region62
        $region61: #{tpu_custom_call.1} parent=27 // pred_region
          %s1502 = smul.u32 32, %s30
          %s1503 = smul.u32 2, %s31
          %s1505 = ssub.s32 4096, 4096
          %1506 = vsyncadd %s1495, %s1505
          %s1507 = smul.addr %s1502, 4
          %s1508 = sadd.s32 %s1503, %s1507
          %s1509 = smul.addr %s1508, 64
          %s1510 = scalar_lea.hbm %s4, %s1509
          %s1511 = sshll.u32 %s1498, 4
          %s1512 = int_to_ptr.vmem [resolvable:$true] %s1511
          %1517 = dma.vmem_to_hbm [thread:$0]  %s1512, 4096, %s1510, %s1495, 128, 256, 8
        $region62: #{tpu_custom_call.1} parent=27 // pred_fallthru
          _
      $region28: #{tpu_custom_call.1} parent=5 // pred_fallthru
        _
      %p1518 = scmp.le.s32.totalorder 2, %s21
      // Predicated region
      $region63: #{tpu_custom_call.1} parent=5 // pred_check
        %p1519 = pneg %p1518
      $region64: #{tpu_custom_call.1} parent=5 // pred_check_branch
        %1521 = sbr.rel (%p1519) target = $region66
      $region65: #{tpu_custom_call.1} parent=5 // pred_region
        %s1522 = ssub.s32 %s21, 2
        // Predicated region
        $region67: #{tpu_custom_call.1} parent=65 // pred_check
          %p1523 = pneg %p111
        $region68: #{tpu_custom_call.1} parent=65 // pred_check_branch
          %1525 = sbr.rel (%p1523) target = $region70
        $region69: #{tpu_custom_call.1} parent=65 // pred_region
          %s1526 = sand.u32 %s96, 1
          %s1527 = scalar_lea.sflag [#allocation9], %s1526
          %s1528 = sand.u32 %s96, 1
          %s1529 = smul.addr %s1528, 256
          %s1530 = scalar_lea.vmem [#allocation12], %s1529
          %1531 = dma.done %s1527, 4096
        $region70: #{tpu_custom_call.1} parent=65 // pred_fallthru
          _
      $region66: #{tpu_custom_call.1} parent=5 // pred_fallthru
        _
    $region6: #{tpu_custom_call.1} parent=1 // loop_footer
      %s25 = sadd.s32 1, %s21
    $region7: #{tpu_custom_call.1} parent=1 // loop_footer_branch
      %20 = sbr.rel target = $region3
    $region8: #{tpu_custom_call.1} parent=1 // loop_exit
      _
    %1532 = vsyncpa [#allocation8], 1
    %s1533 = scalar_lea.sflag [#allocation8], 1
    %1534 = vsyncpa %s1533, 1
    %1535 = vsyncpa [#allocation11], 1
    %1536 = vsyncpa [#allocation9], 1
    %s1537 = scalar_lea.sflag [#allocation9], 1
    %1538 = vsyncpa %s1537, 1
  %1539 = vsyncmov [#allocation4]
  %s1540 = vpop.sfrf %1539
  %p1541 = scmp.eq.s32.totalorder %s1540, 0
  %p1542 = pneg %p1541
  %1544 = shalt.err (%p1542)

</llo_original>
